<compile_context>
chip_gen: v6e
topology: v6e:2x2x1
jax: 0.10.0
libtpu: 0.0.40
codegen_flags: <defaults>
</compile_context>

<pallas_src>
import math

import jax
import jax.numpy as jnp
from jax.experimental import pallas as pl
from jax.experimental.pallas import tpu as pltpu

FREQ_DIM = 256               # frequency_embedding_size (module default)
HALF = FREQ_DIM // 2
MAX_PERIOD = 10000.0


def _round_up(x, m):
    return ((x + m - 1) // m) * m


def timestep_embedder_kernel(t_ref, freqs_ref, w1_ref, b1_ref, w2_ref, b2_ref,
                             o_ref):
    """One (TN, TC) output tile of the fused embedder.

    t_ref:     (TN, 1)         f32      streamed over the row grid axis
    freqs_ref: (1, HALF)       f32      resident
    w1_ref:    (FREQ_DIM, H)   weights  resident
    b1_ref:    (1, H)          f32      resident
    w2_ref:    (H, TC)         weights  resident (TC == H) or column-streamed
    b2_ref:    (1, TC)         f32      resident or column-streamed
    o_ref:     (TN, TC)        out_dtype
    """
    t = t_ref[...]                                        # (TN, 1)
    args = t * freqs_ref[...]                             # (TN, HALF), f32

    # Lane-level concat at the 128-lane boundary (essentially free), then a
    # single K=256 matmul -> fills the 256-deep v6e/v7x MXU in one pass.
    emb = jnp.concatenate([jnp.cos(args), jnp.sin(args)], axis=-1)
    emb = emb.astype(w1_ref.dtype)                        # MXU operand dtype

    h = (jnp.dot(emb, w1_ref[...], preferred_element_type=jnp.float32)
         + b1_ref[...])

    # SiLU in f32 (v5e VPU/EUP have no bf16 path); sigmoid goes to the EUP.
    h = h * jax.nn.sigmoid(h)

    # Linear2: low-precision operands, f32 accumulate, cast on store.
    o_ref[...] = (jnp.dot(h.astype(w2_ref.dtype), w2_ref[...],
                          preferred_element_type=jnp.float32)
                  + b2_ref[...]).astype(o_ref.dtype)


def timestep_embedder(t, w1, b1, w2, b2, *, tile_n=512, tile_cols=None,
                      weight_dtype=jnp.bfloat16, out_dtype=jnp.float32):
    """t: (N,) float; w1: (FREQ_DIM, H) [torch W1.T]; b1: (H,);
       w2: (H, H) [torch W2.T]; b2: (H,).  Returns (N, H) in `out_dtype`."""
    N = t.shape[0]
    H = w1.shape[1]
    assert w1.shape == (FREQ_DIM, H) and w2.shape == (H, H)
    assert b1.shape == (H,) and b2.shape == (H,)
    assert FREQ_DIM % 2 == 0, "odd frequency_embedding_size not supported"

    # Row tiling: pad N up to a sublane-aligned multiple of the tile size.
    TN = min(tile_n, _round_up(N, 8))
    N_pad = _round_up(N, TN)
    n_rows = N_pad // TN

    # Column tiling of w2 / b2 / out: only when there is a single row step
    # (small-batch inference) so the one-time weight DMA is not fully exposed
    # in front of the first matmul.  With multiple row tiles a column-streamed
    # w2 would be re-fetched per row tile, so it stays fully resident instead.
    if tile_cols is None:
        TC = H
        if n_rows == 1 and H >= 256 and H % 128 == 0:
            for cand in range(128, H // 2 + 1, 128):
                if H % cand == 0:
                    TC = cand        # largest multiple-of-128 divisor <= H//2
    else:
        TC = tile_cols
        assert H % TC == 0 and (TC % 128 == 0 or TC == H)
    n_cols = H // TC

    # Host-side prep (padded t column, precomputed freqs, low-precision weights).
    t2 = jnp.zeros((N_pad, 1), jnp.float32).at[:N, 0].set(t.astype(jnp.float32))
    freqs = jnp.exp(
        -math.log(MAX_PERIOD)
        * jnp.arange(HALF, dtype=jnp.float32) / HALF).reshape(1, HALF)
    w1x = w1.astype(weight_dtype)
    w2x = w2.astype(weight_dtype)
    b1r = b1.astype(jnp.float32).reshape(1, H)
    b2r = b2.astype(jnp.float32).reshape(1, H)

    # Generation-aware VMEM budget: capacity minus headroom for the compiler,
    # floored at the 32 MiB scoped default.
    wt_isz = jnp.dtype(weight_dtype).itemsize
    out_isz = jnp.dtype(out_dtype).itemsize
    w2_bufs = 1 if n_cols == 1 else 2
    resident = FREQ_DIM * H * wt_isz + (H + HALF) * 4            # w1 + b1 + freqs
    w2_bytes = w2_bufs * (H * TC * wt_isz + TC * 4)              # w2 + b2
    streamed = 2 * (TN * 4 + TN * TC * out_isz)                  # t + out tiles
    scratch = 4 * TN * max(H, FREQ_DIM) * 4                      # f32 intermediates
    need = resident + w2_bytes + streamed + scratch
    try:
        vmem_cap = pltpu.get_tpu_info().vmem_capacity_bytes
    except Exception:
        vmem_cap = 64 * 1024 * 1024                              # v7x-safe fallback
    vmem_limit = int(min(vmem_cap - 16 * 1024 * 1024,
                         max(32 * 1024 * 1024, 2 * need)))

    # Megacore: split row tiles across the two v7x TensorCores; "parallel" is
    # near-neutral elsewhere, so only CORE_PARALLEL changes codegen.
    try:
        is_v7 = "v7" in jax.devices()[0].device_kind.lower()
    except Exception:
        is_v7 = False
    row_sem = pltpu.CORE_PARALLEL if (is_v7 and n_rows >= 2) else pltpu.PARALLEL
    dims = (row_sem, pltpu.PARALLEL)

    def _call(single_buffer_resident):
        def rspec(shape, index_map):
            # Constant-index_map blocks are fetched exactly once; single-buffer
            # them to halve their VMEM footprint (matters on v7x's 64 MiB).
            if single_buffer_resident:
                return pl.BlockSpec(shape, index_map,
                                    pipeline_mode=pl.Buffered(1))
            return pl.BlockSpec(shape, index_map)

        if n_cols == 1:
            w2_spec = rspec((H, H), lambda i, j: (0, 0))
            b2_spec = rspec((1, H), lambda i, j: (0, 0))
        else:
            # Column-streamed blocks keep default double-buffering.
            w2_spec = pl.BlockSpec((H, TC), lambda i, j: (0, j))
            b2_spec = pl.BlockSpec((1, TC), lambda i, j: (0, j))

        return pl.pallas_call(
            timestep_embedder_kernel,
            out_shape=jax.ShapeDtypeStruct((N_pad, H), out_dtype),
            grid=(n_rows, n_cols),
            in_specs=[
                pl.BlockSpec((TN, 1), lambda i, j: (i, 0)),          # t (streamed)
                rspec((1, HALF), lambda i, j: (0, 0)),               # freqs
                rspec((FREQ_DIM, H), lambda i, j: (0, 0)),           # w1
                rspec((1, H), lambda i, j: (0, 0)),                  # b1
                w2_spec,                                             # w2
                b2_spec,                                             # b2
            ],
            out_specs=pl.BlockSpec((TN, TC), lambda i, j: (i, j)),
            compiler_params=pltpu.CompilerParams(
                dimension_semantics=dims,
                vmem_limit_bytes=vmem_limit),
        )(t2, freqs, w1x, b1r, w2x, b2r)

    try:
        out = _call(True)
    except Exception:
        # pl.Buffered(1) single-buffering is a VMEM-only optimization; fall
        # back to default double-buffering if this Pallas build rejects it.
        out = _call(False)

    return out[:N]


def _reference(t, w1, b1, w2, b2):
    """Pure-JAX f32 reference mirroring the PyTorch forward exactly."""
    freqs = jnp.exp(-math.log(MAX_PERIOD)
                    * jnp.arange(HALF, dtype=jnp.float32) / HALF)
    args = t.astype(jnp.float32)[:, None] * freqs[None]
    emb = jnp.concatenate([jnp.cos(args), jnp.sin(args)], axis=-1)
    h = emb @ w1 + b1
    h = h * jax.nn.sigmoid(h)
    return h @ w2 + b2


if __name__ == "__main__":
    key = jax.random.PRNGKey(0)
    k_t, k_w1, k_b1, k_w2, k_b2, k_t2 = jax.random.split(key, 6)

    # --- Case 1: multi row-tile grid + tail padding, single column tile ->
    #     fully resident (single-buffered) weights. ---
    N, H = 20, 128
    t = jax.random.uniform(k_t, (N,), jnp.float32, 0.0, 1000.0)
    w1 = jax.random.normal(k_w1, (FREQ_DIM, H), jnp.float32) * 0.02
    b1 = jax.random.normal(k_b1, (H,), jnp.float32) * 0.02
    w2 = jax.random.normal(k_w2, (H, H), jnp.float32) * 0.02
    b2 = jax.random.normal(k_b2, (H,), jnp.float32) * 0.02

    out = jax.block_until_ready(timestep_embedder(t, w1, b1, w2, b2, tile_n=8))
    ref = _reference(t, w1, b1, w2, b2)
    assert out.shape == (N, H) and out.dtype == jnp.float32
    err = float(jnp.max(jnp.abs(out - ref)))
    assert jnp.allclose(out, ref, atol=1e-2, rtol=1e-2), \
        f"case1 mismatch vs reference: max abs err = {err}"

    # --- Case 2: small batch (single row tile) -> automatic column tiling of
    #     w2/b2/out (streamed column blocks), bf16 output. ---
    N2, H2 = 4, 256
    t_b = jax.random.uniform(k_t2, (N2,), jnp.float32, 0.0, 1000.0)
    w1b = jax.random.normal(k_w1, (FREQ_DIM, H2), jnp.float32) * 0.02
    b1b = jax.random.normal(k_b1, (H2,), jnp.float32) * 0.02
    w2b = jax.random.normal(k_w2, (H2, H2), jnp.float32) * 0.02
    b2b = jax.random.normal(k_b2, (H2,), jnp.float32) * 0.02

    out2 = jax.block_until_ready(
        timestep_embedder(t_b, w1b, b1b, w2b, b2b, out_dtype=jnp.bfloat16))
    ref2 = _reference(t_b, w1b, b1b, w2b, b2b)
    assert out2.shape == (N2, H2) and out2.dtype == jnp.bfloat16
    err2 = float(jnp.max(jnp.abs(out2.astype(jnp.float32) - ref2)))
    assert jnp.allclose(out2.astype(jnp.float32), ref2, atol=2e-2, rtol=2e-2), \
        f"case2 mismatch vs reference: max abs err = {err2}"

    print("KERNEL_OK")
</pallas_src>

<mosaic_0001>
module attributes {stable_mosaic.version = 11 : i64} {
  func.func @timestep_embedder_kernel(%arg0: i32, %arg1: i32, %arg2: memref<8x1xf32, #tpu.memory_space<vmem>>, %arg3: memref<1x128xf32, #tpu.memory_space<vmem>>, %arg4: memref<256x128xbf16, #tpu.memory_space<vmem>>, %arg5: memref<1x128xf32, #tpu.memory_space<vmem>>, %arg6: memref<128x128xbf16, #tpu.memory_space<vmem>>, %arg7: memref<1x128xf32, #tpu.memory_space<vmem>>, %arg8: memref<8x128xf32, #tpu.memory_space<vmem>>) attributes {dimension_semantics = [#tpu.dimension_semantics<parallel>, #tpu.dimension_semantics<parallel>], iteration_bounds = array<i64: 3, 1>, scalar_prefetch = 0 : i64, scratch_operands = 0 : i64, tpu.core_type = #tpu.core_type<tc>, window_params = [{transform_indices = @transform_0, window_bounds = array<i64: 8, 1>}, {pipeline_mode = #tpu.pipeline_mode<synchronous>, transform_indices = @transform_1, window_bounds = array<i64: 1, 128>}, {pipeline_mode = #tpu.pipeline_mode<synchronous>, transform_indices = @transform_2, window_bounds = array<i64: 256, 128>}, {pipeline_mode = #tpu.pipeline_mode<synchronous>, transform_indices = @transform_3, window_bounds = array<i64: 1, 128>}, {pipeline_mode = #tpu.pipeline_mode<synchronous>, transform_indices = @transform_4, window_bounds = array<i64: 128, 128>}, {pipeline_mode = #tpu.pipeline_mode<synchronous>, transform_indices = @transform_5, window_bounds = array<i64: 1, 128>}, {transform_indices = @transform_6, window_bounds = array<i64: 8, 128>}]} {
    %c0 = arith.constant 0 : index
    %c0_0 = arith.constant 0 : index
    %0 = vector.load %arg2[%c0, %c0_0] : memref<8x1xf32, #tpu.memory_space<vmem>>, vector<8x1xf32>
    %c0_1 = arith.constant 0 : index
    %c0_2 = arith.constant 0 : index
    %1 = vector.load %arg3[%c0_1, %c0_2] : memref<1x128xf32, #tpu.memory_space<vmem>>, vector<1x128xf32>
    %2 = vector.broadcast %0 : vector<8x1xf32> to vector<8x128xf32>
    %3 = vector.broadcast %1 : vector<1x128xf32> to vector<8x128xf32>
    %4 = arith.mulf %2, %3 : vector<8x128xf32>
    %5 = math.cos %4 : vector<8x128xf32>
    %6 = math.sin %4 : vector<8x128xf32>
    %7 = tpu.concatenate %5, %6 in 1 : vector<8x128xf32>, vector<8x128xf32> -> vector<8x256xf32>
    %8 = arith.truncf %7 : vector<8x256xf32> to vector<8x256xbf16>
    %c0_3 = arith.constant 0 : index
    %c0_4 = arith.constant 0 : index
    %9 = vector.load %arg4[%c0_3, %c0_4] : memref<256x128xbf16, #tpu.memory_space<vmem>>, vector<256x128xbf16>
    %cst = arith.constant dense<0.000000e+00> : vector<8x128xf32>
    %10 = tpu.matmul %8, %9, %cst {dimension_numbers = #tpu.dot_dimension_numbers<[1], [0], [0], [1], [0, 0, 1, 1], [], []>} : vector<8x256xbf16>, vector<256x128xbf16>, vector<8x128xf32> -> vector<8x128xf32>
    %c0_5 = arith.constant 0 : index
    %c0_6 = arith.constant 0 : index
    %11 = vector.load %arg5[%c0_5, %c0_6] : memref<1x128xf32, #tpu.memory_space<vmem>>, vector<1x128xf32>
    %12 = vector.broadcast %11 : vector<1x128xf32> to vector<8x128xf32>
    %13 = arith.addf %10, %12 : vector<8x128xf32>
    %14 = arith.negf %13 : vector<8x128xf32>
    %15 = math.exp %14 : vector<8x128xf32>
    %cst_7 = arith.constant 1.000000e+00 : f32
    %16 = vector.broadcast %cst_7 : f32 to vector<8x128xf32>
    %17 = arith.addf %16, %15 : vector<8x128xf32>
    %18 = arith.divf %16, %17 : vector<8x128xf32>
    %19 = arith.mulf %13, %18 : vector<8x128xf32>
    %20 = arith.truncf %19 : vector<8x128xf32> to vector<8x128xbf16>
    %c0_8 = arith.constant 0 : index
    %c0_9 = arith.constant 0 : index
    %21 = vector.load %arg6[%c0_8, %c0_9] : memref<128x128xbf16, #tpu.memory_space<vmem>>, vector<128x128xbf16>
    %cst_10 = arith.constant dense<0.000000e+00> : vector<8x128xf32>
    %22 = tpu.matmul %20, %21, %cst_10 {dimension_numbers = #tpu.dot_dimension_numbers<[1], [0], [0], [1], [0, 0, 1, 1], [], []>} : vector<8x128xbf16>, vector<128x128xbf16>, vector<8x128xf32> -> vector<8x128xf32>
    %c0_11 = arith.constant 0 : index
    %c0_12 = arith.constant 0 : index
    %23 = vector.load %arg7[%c0_11, %c0_12] : memref<1x128xf32, #tpu.memory_space<vmem>>, vector<1x128xf32>
    %24 = vector.broadcast %23 : vector<1x128xf32> to vector<8x128xf32>
    %25 = arith.addf %22, %24 : vector<8x128xf32>
    %c0_13 = arith.constant 0 : index
    %c0_14 = arith.constant 0 : index
    %26 = vector.load %arg8[%c0_13, %c0_14] : memref<8x128xf32, #tpu.memory_space<vmem>>, vector<8x128xf32>
    tpu.vector_store %arg8[%c0_13, %c0_14], %25 {strides = array<i32>} : memref<8x128xf32, #tpu.memory_space<vmem>>, vector<8x128xf32>,
    return
  }
  func.func @transform_0(%arg0: i32, %arg1: i32) -> (i32, i32) {
    %c0_i32 = arith.constant 0 : i32
    %c0_i32_0 = arith.constant 0 : i32
    return %arg0, %c0_i32 : i32, i32
  }
  func.func @transform_1(%arg0: i32, %arg1: i32) -> (i32, i32) {
    %c0_i32 = arith.constant 0 : i32
    %c0_i32_0 = arith.constant 0 : i32
    %c0_i32_1 = arith.constant 0 : i32
    return %c0_i32, %c0_i32_0 : i32, i32
  }
  func.func @transform_2(%arg0: i32, %arg1: i32) -> (i32, i32) {
    %c0_i32 = arith.constant 0 : i32
    %c0_i32_0 = arith.constant 0 : i32
    %c0_i32_1 = arith.constant 0 : i32
    return %c0_i32, %c0_i32_0 : i32, i32
  }
  func.func @transform_3(%arg0: i32, %arg1: i32) -> (i32, i32) {
    %c0_i32 = arith.constant 0 : i32
    %c0_i32_0 = arith.constant 0 : i32
    %c0_i32_1 = arith.constant 0 : i32
    return %c0_i32, %c0_i32_0 : i32, i32
  }
  func.func @transform_4(%arg0: i32, %arg1: i32) -> (i32, i32) {
    %c0_i32 = arith.constant 0 : i32
    %c0_i32_0 = arith.constant 0 : i32
    %c0_i32_1 = arith.constant 0 : i32
    return %c0_i32, %c0_i32_0 : i32, i32
  }
  func.func @transform_5(%arg0: i32, %arg1: i32) -> (i32, i32) {
    %c0_i32 = arith.constant 0 : i32
    %c0_i32_0 = arith.constant 0 : i32
    %c0_i32_1 = arith.constant 0 : i32
    return %c0_i32, %c0_i32_0 : i32, i32
  }
  func.func @transform_6(%arg0: i32, %arg1: i32) -> (i32, i32) {
    %c0_i32 = arith.constant 0 : i32
    return %arg0, %arg1 : i32, i32
  }
}

module attributes {stable_mosaic.version = 11 : i64} {
  func.func @timestep_embedder_kernel(%arg0: i32, %arg1: i32, %arg2: memref<8x1xf32, #tpu.memory_space<vmem>>, %arg3: memref<1x128xf32, #tpu.memory_space<vmem>>, %arg4: memref<256x128xbf16, #tpu.memory_space<vmem>>, %arg5: memref<1x128xf32, #tpu.memory_space<vmem>>, %arg6: memref<128x128xbf16, #tpu.memory_space<vmem>>, %arg7: memref<1x128xf32, #tpu.memory_space<vmem>>, %arg8: memref<8x128xf32, #tpu.memory_space<vmem>>) attributes {dimension_semantics = [#tpu.dimension_semantics<parallel>, #tpu.dimension_semantics<parallel>], iteration_bounds = array<i64: 3, 1>, scalar_prefetch = 0 : i64, scratch_operands = 0 : i64, tpu.core_type = #tpu.core_type<tc>, window_params = [{transform_indices = @transform_0, window_bounds = array<i64: 8, 1>}, {pipeline_mode = #tpu.pipeline_mode<synchronous>, transform_indices = @transform_1, window_bounds = array<i64: 1, 128>}, {pipeline_mode = #tpu.pipeline_mode<synchronous>, transform_indices = @transform_2, window_bounds = array<i64: 256, 128>}, {pipeline_mode = #tpu.pipeline_mode<synchronous>, transform_indices = @transform_3, window_bounds = array<i64: 1, 128>}, {pipeline_mode = #tpu.pipeline_mode<synchronous>, transform_indices = @transform_4, window_bounds = array<i64: 128, 128>}, {pipeline_mode = #tpu.pipeline_mode<synchronous>, transform_indices = @transform_5, window_bounds = array<i64: 1, 128>}, {transform_indices = @transform_6, window_bounds = array<i64: 8, 128>}]} {
    %c0 = arith.constant 0 : index
    %c0_0 = arith.constant 0 : index
    %0 = vector.load %arg2[%c0, %c0_0] : memref<8x1xf32, #tpu.memory_space<vmem>>, vector<8x1xf32>
    %c0_1 = arith.constant 0 : index
    %c0_2 = arith.constant 0 : index
    %1 = vector.load %arg3[%c0_1, %c0_2] : memref<1x128xf32, #tpu.memory_space<vmem>>, vector<1x128xf32>
    %2 = vector.broadcast %0 : vector<8x1xf32> to vector<8x128xf32>
    %3 = vector.broadcast %1 : vector<1x128xf32> to vector<8x128xf32>
    %4 = arith.mulf %2, %3 : vector<8x128xf32>
    %5 = math.cos %4 : vector<8x128xf32>
    %6 = math.sin %4 : vector<8x128xf32>
    %7 = tpu.concatenate %5, %6 in 1 : vector<8x128xf32>, vector<8x128xf32> -> vector<8x256xf32>
    %8 = arith.truncf %7 : vector<8x256xf32> to vector<8x256xbf16>
    %c0_3 = arith.constant 0 : index
    %c0_4 = arith.constant 0 : index
    %9 = vector.load %arg4[%c0_3, %c0_4] : memref<256x128xbf16, #tpu.memory_space<vmem>>, vector<256x128xbf16>
    %cst = arith.constant dense<0.000000e+00> : vector<8x128xf32>
    %10 = tpu.matmul %8, %9, %cst {dimension_numbers = #tpu.dot_dimension_numbers<[1], [0], [0], [1], [0, 0, 1, 1], [], []>} : vector<8x256xbf16>, vector<256x128xbf16>, vector<8x128xf32> -> vector<8x128xf32>
    %c0_5 = arith.constant 0 : index
    %c0_6 = arith.constant 0 : index
    %11 = vector.load %arg5[%c0_5, %c0_6] : memref<1x128xf32, #tpu.memory_space<vmem>>, vector<1x128xf32>
    %12 = vector.broadcast %11 : vector<1x128xf32> to vector<8x128xf32>
    %13 = arith.addf %10, %12 : vector<8x128xf32>
    %14 = arith.negf %13 : vector<8x128xf32>
    %15 = math.exp %14 : vector<8x128xf32>
    %cst_7 = arith.constant 1.000000e+00 : f32
    %16 = vector.broadcast %cst_7 : f32 to vector<8x128xf32>
    %17 = arith.addf %16, %15 : vector<8x128xf32>
    %18 = arith.divf %16, %17 : vector<8x128xf32>
    %19 = arith.mulf %13, %18 : vector<8x128xf32>
    %20 = arith.truncf %19 : vector<8x128xf32> to vector<8x128xbf16>
    %c0_8 = arith.constant 0 : index
    %c0_9 = arith.constant 0 : index
    %21 = vector.load %arg6[%c0_8, %c0_9] : memref<128x128xbf16, #tpu.memory_space<vmem>>, vector<128x128xbf16>
    %cst_10 = arith.constant dense<0.000000e+00> : vector<8x128xf32>
    %22 = tpu.matmul %20, %21, %cst_10 {dimension_numbers = #tpu.dot_dimension_numbers<[1], [0], [0], [1], [0, 0, 1, 1], [], []>} : vector<8x128xbf16>, vector<128x128xbf16>, vector<8x128xf32> -> vector<8x128xf32>
    %c0_11 = arith.constant 0 : index
    %c0_12 = arith.constant 0 : index
    %23 = vector.load %arg7[%c0_11, %c0_12] : memref<1x128xf32, #tpu.memory_space<vmem>>, vector<1x128xf32>
    %24 = vector.broadcast %23 : vector<1x128xf32> to vector<8x128xf32>
    %25 = arith.addf %22, %24 : vector<8x128xf32>
    %c0_13 = arith.constant 0 : index
    %c0_14 = arith.constant 0 : index
    %26 = vector.load %arg8[%c0_13, %c0_14] : memref<8x128xf32, #tpu.memory_space<vmem>>, vector<8x128xf32>
    tpu.vector_store %arg8[%c0_13, %c0_14], %25 {strides = array<i32>} : memref<8x128xf32, #tpu.memory_space<vmem>>, vector<8x128xf32>,
    return
  }
  func.func @transform_0(%arg0: i32, %arg1: i32) -> (i32, i32) {
    %c0_i32 = arith.constant 0 : i32
    %c0_i32_0 = arith.constant 0 : i32
    return %arg0, %c0_i32 : i32, i32
  }
  func.func @transform_1(%arg0: i32, %arg1: i32) -> (i32, i32) {
    %c0_i32 = arith.constant 0 : i32
    %c0_i32_0 = arith.constant 0 : i32
    %c0_i32_1 = arith.constant 0 : i32
    return %c0_i32, %c0_i32_0 : i32, i32
  }
  func.func @transform_2(%arg0: i32, %arg1: i32) -> (i32, i32) {
    %c0_i32 = arith.constant 0 : i32
    %c0_i32_0 = arith.constant 0 : i32
    %c0_i32_1 = arith.constant 0 : i32
    return %c0_i32, %c0_i32_0 : i32, i32
  }
  func.func @transform_3(%arg0: i32, %arg1: i32) -> (i32, i32) {
    %c0_i32 = arith.constant 0 : i32
    %c0_i32_0 = arith.constant 0 : i32
    %c0_i32_1 = arith.constant 0 : i32
    return %c0_i32, %c0_i32_0 : i32, i32
  }
  func.func @transform_4(%arg0: i32, %arg1: i32) -> (i32, i32) {
    %c0_i32 = arith.constant 0 : i32
    %c0_i32_0 = arith.constant 0 : i32
    %c0_i32_1 = arith.constant 0 : i32
    return %c0_i32, %c0_i32_0 : i32, i32
  }
  func.func @transform_5(%arg0: i32, %arg1: i32) -> (i32, i32) {
    %c0_i32 = arith.constant 0 : i32
    %c0_i32_0 = arith.constant 0 : i32
    %c0_i32_1 = arith.constant 0 : i32
    return %c0_i32, %c0_i32_0 : i32, i32
  }
  func.func @transform_6(%arg0: i32, %arg1: i32) -> (i32, i32) {
    %c0_i32 = arith.constant 0 : i32
    return %arg0, %arg1 : i32, i32
  }
}

</mosaic_0001>

<llo_original>
// kernel: tpu_custom_call.1
$region0: #{tpu_custom_call.1}
  #allocation0 [shape = 'u32[]', space=smem, size = 0x4, offset = 0x4, fixed_abs, tag = 'smem constant byte address 0x4 - core index']
  #allocation1 [shape = 'u32[144,128]{1,0:T(1,128)}', space=vmem, size = 0x12000, scoped, tag = 'internal scratch']
  %s0 = inlined_call_operand.vmem [shape: f32[24,1], index: 0, kind: input, shape index: {}]
  %s1 = inlined_call_operand.vmem [shape: f32[1,128], index: 1, kind: input, shape index: {}]
  %s2 = inlined_call_operand.hbm [shape: bf16[256,128], index: 2, kind: input, shape index: {}]
  %s3 = inlined_call_operand.vmem [shape: f32[1,128], index: 3, kind: input, shape index: {}]
  %s4 = inlined_call_operand.hbm [shape: bf16[128,128], index: 4, kind: input, shape index: {}]
  %s5 = inlined_call_operand.vmem [shape: f32[1,128], index: 5, kind: input, shape index: {}]
  %s6 = inlined_call_operand.hbm [shape: f32[24,128], index: 6, kind: output, shape index: {}]
  %s7 = sld [smem:[#allocation0]]
  $region65: #{tpu_custom_call.1} parent=0
    _
  %s9 = ssub.s32 1, %s7
  %s10 = scalar_select 0, %s9, %s7
  $region1: #{tpu_custom_call.1} parent=0
    #allocation2 [shape = 'u8[65536]{0}', space=vmem, size = 0x10000, scoped, tag = 'input window, operand 2, single buffered']
    #allocation3 [shape = 's32[2]{0}', space=sflag, size = 0x8, scoped, tag = 'scoped memory for tpu_custom_call.1']
    #allocation4 [shape = 's32[2]{0}', space=sflag, size = 0x8, scoped, tag = 'scoped memory for tpu_custom_call.1']
    #allocation5 [shape = 'u8[32768]{0}', space=vmem, size = 0x8000, scoped, tag = 'input window, operand 4, single buffered']
    #allocation6 [shape = 's32[1]{0}', space=sflag, size = 0x4, scoped, tag = 'scoped memory for tpu_custom_call.1']
    #allocation7 [shape = 'u8[8192]{0}', space=vmem, size = 0x2000, scoped, tag = 'output window, operand 0']
    %11 = vsyncpa [#allocation3], 0
    %12 = vsyncpa [#allocation6], 0
    %13 = vsyncpa [#allocation4], 0
    %s14 = scalar_lea.sflag [#allocation4], 1
    %15 = vsyncpa %s14, 0
    loop: start=0, step=1, limit=5
    $region2: #{tpu_custom_call.1} parent=1 // loop_pre_header
      _
    $region3: #{tpu_custom_call.1} parent=1 // loop_header
      %s17 = sphi 0, %s21
      %p18 = scmp.ge.s32.totalorder %s17, 5
      %s24 = sphi 0, %s36
      %s25 = sphi 0, %s32
      %s26 = sphi 0, %s24
      %s27 = sphi 0, %s25
      %s28 = sphi 0, %s26
      %s29 = sphi 0, %s27
      %s39 = sphi 0, %s41
      %s42 = sphi 0, %s39
      %s43 = sphi 0, %s42
      %s59 = sphi 0, %s43
      %s63 = sphi 0, %s63
      %s65 = sphi 0, %s63
      %s66 = sphi 0, %s65
      %s80 = sphi 0, %s66
      %s84 = sphi 0, %s84
      %s86 = sphi 0, %s84
      %s87 = sphi 0, %s86
      %s101 = sphi 0, %s87
      %s105 = sphi 0, %s105
      %s107 = sphi 0, %s105
      %s108 = sphi 0, %s107
      %s122 = sphi 0, %s108
      %s126 = sphi 0, %s126
      %s128 = sphi 0, %s126
      %s129 = sphi 0, %s128
      %s143 = sphi 0, %s129
      %s147 = sphi 0, %s147
      %s149 = sphi 0, %s147
      %s150 = sphi 0, %s149
      %s164 = sphi 0, %s150
      %s172 = sphi 0, %s174
      %s175 = sphi 0, %s172
      %s176 = sphi 0, %s175
      %s192 = sphi 0, %s176
    $region4: #{tpu_custom_call.1} parent=1 // loop_header_branch
      %20 = sbr.rel (%p18) target = $region8
    $region5: #{tpu_custom_call.1} parent=1 // loop_body
      %s22 = ssub.s32 %s17, 1
      %s23 = ssub.s32 %s17, 2
      %s30 = sadd.s32 1, %s25
      %p31 = scmp.ge.s32.totalorder %s30, 1
      %s32 = scalar_select %p31, 0, %s30
      %s33 = sadd.s32 1, %s24
      %s34 = scalar_select %p31, %s33, %s24
      %p35 = scmp.ge.s32.totalorder %s34, 3
      %s36 = scalar_select %p35, 0, %s34
      %s37 = ssub.s32 %s24, %s36
      %p38 = scmp.eq.s32.totalorder %s37, 0
      %s40 = sadd.s32 %s39, 1
      %s41 = scalar_select %p38, %s39, %s40
      %p44 = pneg %p38
      %p45 = scmp.eq.s32.totalorder %s17, 2
      %p46 = por %p44, %p45
      %p47 = scmp.ne.s32.totalorder %s39, %s42
      %p48 = scmp.eq.s32.totalorder %s17, 0
      %p49 = por %p47, %p48
      %p50 = scmp.ne.s32.totalorder %s39, %s42
      %p51 = scmp.eq.s32.totalorder %s22, 2
      %p52 = por %p50, %p51
      %p53 = scmp.ne.s32.totalorder %s42, %s43
      %p54 = scmp.eq.s32.totalorder %s22, 0
      %p55 = por %p53, %p54
      %p56 = scmp.ne.s32.totalorder %s42, %s43
      %p57 = scmp.eq.s32.totalorder %s23, 2
      %p58 = por %p56, %p57
      %p60 = scmp.ne.s32.totalorder %s43, %s59
      %p61 = scmp.eq.s32.totalorder %s23, 0
      %p62 = por %p60, %p61
      %s64 = sadd.s32 %s63, 1
      %p67 = scmp.eq.s32.totalorder %s17, 2
      %p68 = scmp.ne.s32.totalorder %s63, %s65
      %p69 = scmp.eq.s32.totalorder %s17, 0
      %p70 = por %p68, %p69
      %p71 = scmp.ne.s32.totalorder %s63, %s65
      %p72 = scmp.eq.s32.totalorder %s22, 2
      %p73 = por %p71, %p72
      %p74 = scmp.ne.s32.totalorder %s65, %s66
      %p75 = scmp.eq.s32.totalorder %s22, 0
      %p76 = por %p74, %p75
      %p77 = scmp.ne.s32.totalorder %s65, %s66
      %p78 = scmp.eq.s32.totalorder %s23, 2
      %p79 = por %p77, %p78
      %p81 = scmp.ne.s32.totalorder %s66, %s80
      %p82 = scmp.eq.s32.totalorder %s23, 0
      %p83 = por %p81, %p82
      %s85 = sadd.s32 %s84, 1
      %p88 = scmp.eq.s32.totalorder %s17, 2
      %p89 = scmp.ne.s32.totalorder %s84, %s86
      %p90 = scmp.eq.s32.totalorder %s17, 0
      %p91 = por %p89, %p90
      %p92 = scmp.ne.s32.totalorder %s84, %s86
      %p93 = scmp.eq.s32.totalorder %s22, 2
      %p94 = por %p92, %p93
      %p95 = scmp.ne.s32.totalorder %s86, %s87
      %p96 = scmp.eq.s32.totalorder %s22, 0
      %p97 = por %p95, %p96
      %p98 = scmp.ne.s32.totalorder %s86, %s87
      %p99 = scmp.eq.s32.totalorder %s23, 2
      %p100 = por %p98, %p99
      %p102 = scmp.ne.s32.totalorder %s87, %s101
      %p103 = scmp.eq.s32.totalorder %s23, 0
      %p104 = por %p102, %p103
      %s106 = sadd.s32 %s105, 1
      %p109 = scmp.eq.s32.totalorder %s17, 2
      %p110 = scmp.ne.s32.totalorder %s105, %s107
      %p111 = scmp.eq.s32.totalorder %s17, 0
      %p112 = por %p110, %p111
      %p113 = scmp.ne.s32.totalorder %s105, %s107
      %p114 = scmp.eq.s32.totalorder %s22, 2
      %p115 = por %p113, %p114
      %p116 = scmp.ne.s32.totalorder %s107, %s108
      %p117 = scmp.eq.s32.totalorder %s22, 0
      %p118 = por %p116, %p117
      %p119 = scmp.ne.s32.totalorder %s107, %s108
      %p120 = scmp.eq.s32.totalorder %s23, 2
      %p121 = por %p119, %p120
      %p123 = scmp.ne.s32.totalorder %s108, %s122
      %p124 = scmp.eq.s32.totalorder %s23, 0
      %p125 = por %p123, %p124
      %s127 = sadd.s32 %s126, 1
      %p130 = scmp.eq.s32.totalorder %s17, 2
      %p131 = scmp.ne.s32.totalorder %s126, %s128
      %p132 = scmp.eq.s32.totalorder %s17, 0
      %p133 = por %p131, %p132
      %p134 = scmp.ne.s32.totalorder %s126, %s128
      %p135 = scmp.eq.s32.totalorder %s22, 2
      %p136 = por %p134, %p135
      %p137 = scmp.ne.s32.totalorder %s128, %s129
      %p138 = scmp.eq.s32.totalorder %s22, 0
      %p139 = por %p137, %p138
      %p140 = scmp.ne.s32.totalorder %s128, %s129
      %p141 = scmp.eq.s32.totalorder %s23, 2
      %p142 = por %p140, %p141
      %p144 = scmp.ne.s32.totalorder %s129, %s143
      %p145 = scmp.eq.s32.totalorder %s23, 0
      %p146 = por %p144, %p145
      %s148 = sadd.s32 %s147, 1
      %p151 = scmp.eq.s32.totalorder %s17, 2
      %p152 = scmp.ne.s32.totalorder %s147, %s149
      %p153 = scmp.eq.s32.totalorder %s17, 0
      %p154 = por %p152, %p153
      %p155 = scmp.ne.s32.totalorder %s147, %s149
      %p156 = scmp.eq.s32.totalorder %s22, 2
      %p157 = por %p155, %p156
      %p158 = scmp.ne.s32.totalorder %s149, %s150
      %p159 = scmp.eq.s32.totalorder %s22, 0
      %p160 = por %p158, %p159
      %p161 = scmp.ne.s32.totalorder %s149, %s150
      %p162 = scmp.eq.s32.totalorder %s23, 2
      %p163 = por %p161, %p162
      %p165 = scmp.ne.s32.totalorder %s150, %s164
      %p166 = scmp.eq.s32.totalorder %s23, 0
      %p167 = por %p165, %p166
      %s168 = ssub.s32 %s24, %s36
      %s169 = ssub.s32 %s25, %s32
      %s170 = sor.u32 %s168, %s169
      %p171 = scmp.eq.s32.totalorder %s170, 0
      %s173 = sadd.s32 %s172, 1
      %s174 = scalar_select %p171, %s172, %s173
      %p177 = pneg %p171
      %p178 = scmp.eq.s32.totalorder %s17, 2
      %p179 = por %p177, %p178
      %p180 = scmp.ne.s32.totalorder %s172, %s175
      %p181 = scmp.eq.s32.totalorder %s17, 0
      %p182 = por %p180, %p181
      %p183 = scmp.ne.s32.totalorder %s172, %s175
      %p184 = scmp.eq.s32.totalorder %s22, 2
      %p185 = por %p183, %p184
      %p186 = scmp.ne.s32.totalorder %s175, %s176
      %p187 = scmp.eq.s32.totalorder %s22, 0
      %p188 = por %p186, %p187
      %p189 = scmp.ne.s32.totalorder %s175, %s176
      %p190 = scmp.eq.s32.totalorder %s23, 2
      %p191 = por %p189, %p190
      %p193 = scmp.ne.s32.totalorder %s176, %s192
      %p194 = scmp.eq.s32.totalorder %s23, 0
      %p195 = por %p193, %p194
      %p196 = scmp.le.s32.totalorder 1, %s17
      %p197 = scmp.lt.s32.totalorder %s17, 4
      %p198 = pnand %p196, %p197
      %p199 = pneg %p198
      // Predicated region
      $region9: #{tpu_custom_call.1} parent=5 // pred_check
        _
      $region10: #{tpu_custom_call.1} parent=5 // pred_check_branch
        %201 = sbr.rel (%p198) target = $region12
      $region11: #{tpu_custom_call.1} parent=5 // pred_region
        %s202 = ssub.s32 %s17, 1
        // Predicated region
        $region13: #{tpu_custom_call.1} parent=11 // pred_check
          %p203 = pneg %p76
        $region14: #{tpu_custom_call.1} parent=11 // pred_check_branch
          %205 = sbr.rel (%p203) target = $region16
        $region15: #{tpu_custom_call.1} parent=11 // pred_region
          _
        $region16: #{tpu_custom_call.1} parent=11 // pred_fallthru
          _
        // Predicated region
        $region17: #{tpu_custom_call.1} parent=11 // pred_check
          %p206 = pneg %p97
        $region18: #{tpu_custom_call.1} parent=11 // pred_check_branch
          %208 = sbr.rel (%p206) target = $region20
        $region19: #{tpu_custom_call.1} parent=11 // pred_region
          %s210 = ssub.s32 2048, 2048
          %211 = vsyncadd [#allocation3], %s210
          %s212 = sshll.u32 [#allocation2], 4
          %s213 = int_to_ptr.vmem [resolvable:$true] %s212
          %218 = dma.hbm_to_vmem [thread:$0]  %s2, 2048, %s213, [#allocation3], 64, 64, 4
        $region20: #{tpu_custom_call.1} parent=11 // pred_fallthru
          _
        // Predicated region
        $region21: #{tpu_custom_call.1} parent=11 // pred_check
          %p219 = pneg %p118
        $region22: #{tpu_custom_call.1} parent=11 // pred_check_branch
          %221 = sbr.rel (%p219) target = $region24
        $region23: #{tpu_custom_call.1} parent=11 // pred_region
          _
        $region24: #{tpu_custom_call.1} parent=11 // pred_fallthru
          _
        // Predicated region
        $region25: #{tpu_custom_call.1} parent=11 // pred_check
          %p222 = pneg %p139
        $region26: #{tpu_custom_call.1} parent=11 // pred_check_branch
          %224 = sbr.rel (%p222) target = $region28
        $region27: #{tpu_custom_call.1} parent=11 // pred_region
          %s226 = ssub.s32 1024, 1024
          %227 = vsyncadd [#allocation6], %s226
          %s228 = sshll.u32 [#allocation5], 4
          %s229 = int_to_ptr.vmem [resolvable:$true] %s228
          %234 = dma.hbm_to_vmem [thread:$0]  %s4, 1024, %s229, [#allocation6], 64, 64, 4
        $region28: #{tpu_custom_call.1} parent=11 // pred_fallthru
          _
        // Predicated region
        $region29: #{tpu_custom_call.1} parent=11 // pred_check
          %p235 = pneg %p160
        $region30: #{tpu_custom_call.1} parent=11 // pred_check_branch
          %237 = sbr.rel (%p235) target = $region32
        $region31: #{tpu_custom_call.1} parent=11 // pred_region
          _
        $region32: #{tpu_custom_call.1} parent=11 // pred_fallthru
          _
      $region12: #{tpu_custom_call.1} parent=5 // pred_fallthru
        _
      %p238 = scmp.lt.s32.totalorder %s17, 3
      // Predicated region
      $region33: #{tpu_custom_call.1} parent=5 // pred_check
        %p239 = pneg %p238
      $region34: #{tpu_custom_call.1} parent=5 // pred_check_branch
        %241 = sbr.rel (%p239) target = $region36
      $region35: #{tpu_custom_call.1} parent=5 // pred_region
        // Predicated region
        $region37: #{tpu_custom_call.1} parent=35 // pred_check
          %p242 = pneg %p49
        $region38: #{tpu_custom_call.1} parent=35 // pred_check_branch
          %244 = sbr.rel (%p242) target = $region40
        $region39: #{tpu_custom_call.1} parent=35 // pred_region
          %p245 = scmp.lt.s32.totalorder %s24, 2
          %s246 = scalar_select %p245, %s24, 2
          %s247 = smul.addr %s246, 8
          %s248 = scalar_lea.vmem %s0, %s247
        $region40: #{tpu_custom_call.1} parent=35 // pred_fallthru
          _
      $region36: #{tpu_custom_call.1} parent=5 // pred_fallthru
        _
      %p249 = scmp.le.s32.totalorder 1, %s17
      %p250 = scmp.lt.s32.totalorder %s17, 4
      %p251 = pnand %p249, %p250
      %p252 = pneg %p251
      // Predicated region
      $region41: #{tpu_custom_call.1} parent=5 // pred_check
        _
      $region42: #{tpu_custom_call.1} parent=5 // pred_check_branch
        %254 = sbr.rel (%p251) target = $region44
      $region43: #{tpu_custom_call.1} parent=5 // pred_region
        %s255 = ssub.s32 %s17, 1
        // Predicated region
        $region45: #{tpu_custom_call.1} parent=43 // pred_check
          %p256 = pneg %p97
        $region46: #{tpu_custom_call.1} parent=43 // pred_check_branch
          %258 = sbr.rel (%p256) target = $region48
        $region47: #{tpu_custom_call.1} parent=43 // pred_region
          %259 = dma.done [#allocation3], 2048
        $region48: #{tpu_custom_call.1} parent=43 // pred_fallthru
          _
        // Predicated region
        $region49: #{tpu_custom_call.1} parent=43 // pred_check
          %p260 = pneg %p139
        $region50: #{tpu_custom_call.1} parent=43 // pred_check_branch
          %262 = sbr.rel (%p260) target = $region52
        $region51: #{tpu_custom_call.1} parent=43 // pred_region
          %263 = dma.done [#allocation6], 1024
        $region52: #{tpu_custom_call.1} parent=43 // pred_fallthru
          _
        %p264 = scmp.lt.s32.totalorder %s26, 2
        %s265 = scalar_select %p264, %s26, 2
        %s266 = smul.addr %s265, 8
        %s267 = scalar_lea.vmem %s0, %s266
        %p268 = pneg %p55
        %p269 = pneg %p52
        %p270 = pneg %p76
        %p271 = pneg %p73
        %p272 = pneg %p97
        %p273 = pneg %p94
        %p274 = pneg %p118
        %p275 = pneg %p115
        %p276 = pneg %p139
        %p277 = pneg %p136
        %p278 = pneg %p160
        %p279 = pneg %p157
        %p280 = pneg %p188
        %p281 = pneg %p185
        %s282 = sand.u32 %s175, 1
        %s283 = scalar_lea.sflag [#allocation4], %s282
        %s284 = sand.u32 %s175, 1
        %s285 = smul.addr %s284, 8
        %s286 = scalar_lea.vmem [#allocation7], %s285
        %p287 = scmp.lt.s32.totalorder %s26, 2
        %s288 = scalar_select %p287, %s26, 2
        %s289 = smul.addr %s288, 8
        %s290 = scalar_lea.vmem %s0, %s289
        %v292 = vld [vmem:[%s290] sm:$0xff]
        %v293 = vld [vmem:[%s1] sm:$0x1]
        %295 = vset.pattern.permute.xlu0 0
        %296 = vperm.xlu0 %295, %v292
        %v297 = vpop.permute.xlu0 %296
        %v300 = vlaneseq
        %v301 = vshrl.u32 %v300, 7
        %v302 = vsub.s32 0, %v301
        %v303 = vrot.slane %v293, %v302
        %v305 = vmul.f32 %v297, %v303
        %v306 = vand.u32 2147483647, %v305
        %vm307 = vcmp.le.f32.partialorder %v306, 0.7853982
        %vm308 = vcmp.lt.s32.totalorder %v305, 0
        %v309 = vand.u32 %v305, 2139095040
        %v310 = vshrl.u32 %v309, 23
        %v311 = vsub.s32 %v310, 127
        %v312 = vand.u32 2147483647, %v305
        %v313 = vand.u32 %v312, 8388607
        %v314 = vor.u32 %v313, 8388608
        %v315 = vsub.s32 0, %v314
        %v316 = vadd.s32 %v311, 1
        %vm317 = vcmp.gt.s32.totalorder %v316, 0
        %v318 = vsel %vm317, %v316, 0
        %v319 = vshrl.u32 %v318, 5
        %v320 = vand.u32 %v318, 31
        %v321 = vsub.s32 32, %v320
        %v322 = vshrl.u32 683565275, %v321
        %v323 = vshll.u32 683565275, %v320
        %v324 = vshrl.u32 2475754826, %v321
        %v325 = vor.u32 %v323, %v324
        %v326 = vshll.u32 2475754826, %v320
        %v327 = vshrl.u32 2131351028, %v321
        %v328 = vor.u32 %v326, %v327
        %v329 = vshll.u32 2131351028, %v320
        %v330 = vshrl.u32 2102212464, %v321
        %v331 = vor.u32 %v329, %v330
        %v332 = vshll.u32 2102212464, %v320
        %v333 = vshrl.u32 920167782, %v321
        %v334 = vor.u32 %v332, %v333
        %v335 = vshll.u32 920167782, %v320
        %v336 = vshrl.u32 1326507024, %v321
        %v337 = vor.u32 %v335, %v336
        %vm338 = vcmp.lt.s32.totalorder %v319, 1
        %vm339 = vcmp.lt.s32.totalorder %v319, 2
        %vm340 = vcmp.lt.s32.totalorder %v319, 3
        %vm341 = vcmp.lt.s32.totalorder %v319, 4
        %v342 = vsel %vm338, %v322, %v325
        %v343 = vsel %vm341, %v331, 2102212464
        %v344 = vsel %vm340, %v328, %v343
        %v345 = vsel %vm339, %v342, %v344
        %v346 = vsel %vm338, %v325, %v328
        %v347 = vsel %vm341, %v334, 920167782
        %v348 = vsel %vm340, %v331, %v347
        %v349 = vsel %vm339, %v346, %v348
        %v350 = vsel %vm338, %v328, %v331
        %v351 = vsel %vm341, %v337, 1326507024
        %v352 = vsel %vm340, %v334, %v351
        %v353 = vsel %vm339, %v350, %v352
        %v354 = vshll.u32 %v314, 8
        %v355 = vmul.u32.u64.compose %v354, %v353
        %v356 = vextract.low.u32 %v355
        %v357 = vextract.high.u32 %v355
        %v358 = vmul.u32.u64.compose %v354, %v349
        %v359 = vextract.low.u32 %v358
        %v360 = vextract.high.u32 %v358
        %v361 = vmul.u32 %v354, %v345
        %v362 = vadd.s32 %v357, %v359
        %vm363 = vc.u32 %v357, %v359
        %v364 = vadd.s32 %v360, 1
        %v365 = vsel %vm363, %v364, %v360
        %v366 = vadd.s32 %v361, %v365
        %v367 = vadd.s32 %v366, 536870912
        %v368 = vshrl.u32 %v367, 30
        %v369 = vshll.u32 %v368, 30
        %v370 = vsub.s32 %v366, %v369
        %vm371 = vcmp.lt.s32.totalorder %v370, 0
        %v372 = vsub.s32 0, %v370
        %v373 = vsel %vm371, %v372, %v370
        %v374 = vclz %v373
        %v375 = vsub.s32 %v374, 2
        %vm376 = vcmp.gt.s32.totalorder 0, %v375
        %v377 = vsel %vm376, 0, %v375
        %v378 = vsub.s32 32, %v377
        %v379 = vshll.u32 %v370, %v377
        %v380 = vshrl.u32 %v362, %v378
        %v381 = vor.u32 %v379, %v380
        %v382 = vsub.s32 4294967266, %v377
        %v383 = vadd.s32 %v382, 127
        %v384 = vshll.u32 %v383, 23
        %v385 = vor.u32 4788187, %v384
        %v386 = vand.u32 2147483647, %v385
        %v388 = vcvt.s32.f32 %v381
        %v389 = vmul.f32 %v388, %v386
        %v390 = vxor.u32 %v389, 2147483648
        %v391 = vsel %vm308, %v390, %v389
        %v392 = vsub.s32 4, %v368
        %v393 = vsel %vm308, %v392, %v368
        %v394 = vsel %vm307, %v305, %v391
        %v395 = vsel %vm307, 0, %v393
        %v396 = vcosq.f32.pop %v394
        %v397 = vsinq.f32.pop %v394
        %vm398 = vweird.f32 %v305
        %v399 = vand.u32 %v395, 3
        %vm400 = vcmp.lt.s32.totalorder %v399, 2
        %vm401 = vcmp.eq.s32.totalorder %v399, 0
        %v402 = vxor.u32 %v397, 2147483648
        %v403 = vsel %vm401, %v396, %v402
        %vm404 = vcmp.eq.s32.totalorder %v399, 2
        %v405 = vxor.u32 %v396, 2147483648
        %v406 = vsel %vm404, %v405, %v397
        %v407 = vsel %vm400, %v403, %v406
        %v408 = vsel %vm398, nan, %v407
        %v409 = vand.u32 2147483647, %v305
        %vm410 = vcmp.le.f32.partialorder %v409, 0.7853982
        %vm411 = vcmp.lt.s32.totalorder %v305, 0
        %v412 = vand.u32 %v305, 2139095040
        %v413 = vshrl.u32 %v412, 23
        %v414 = vsub.s32 %v413, 127
        %v415 = vand.u32 2147483647, %v305
        %v416 = vand.u32 %v415, 8388607
        %v417 = vor.u32 %v416, 8388608
        %v418 = vsub.s32 0, %v417
        %v419 = vadd.s32 %v414, 1
        %vm420 = vcmp.gt.s32.totalorder %v419, 0
        %v421 = vsel %vm420, %v419, 0
        %v422 = vshrl.u32 %v421, 5
        %v423 = vand.u32 %v421, 31
        %v424 = vsub.s32 32, %v423
        %v425 = vshrl.u32 683565275, %v424
        %v426 = vshll.u32 683565275, %v423
        %v427 = vshrl.u32 2475754826, %v424
        %v428 = vor.u32 %v426, %v427
        %v429 = vshll.u32 2475754826, %v423
        %v430 = vshrl.u32 2131351028, %v424
        %v431 = vor.u32 %v429, %v430
        %v432 = vshll.u32 2131351028, %v423
        %v433 = vshrl.u32 2102212464, %v424
        %v434 = vor.u32 %v432, %v433
        %v435 = vshll.u32 2102212464, %v423
        %v436 = vshrl.u32 920167782, %v424
        %v437 = vor.u32 %v435, %v436
        %v438 = vshll.u32 920167782, %v423
        %v439 = vshrl.u32 1326507024, %v424
        %v440 = vor.u32 %v438, %v439
        %vm441 = vcmp.lt.s32.totalorder %v422, 1
        %vm442 = vcmp.lt.s32.totalorder %v422, 2
        %vm443 = vcmp.lt.s32.totalorder %v422, 3
        %vm444 = vcmp.lt.s32.totalorder %v422, 4
        %v445 = vsel %vm441, %v425, %v428
        %v446 = vsel %vm444, %v434, 2102212464
        %v447 = vsel %vm443, %v431, %v446
        %v448 = vsel %vm442, %v445, %v447
        %v449 = vsel %vm441, %v428, %v431
        %v450 = vsel %vm444, %v437, 920167782
        %v451 = vsel %vm443, %v434, %v450
        %v452 = vsel %vm442, %v449, %v451
        %v453 = vsel %vm441, %v431, %v434
        %v454 = vsel %vm444, %v440, 1326507024
        %v455 = vsel %vm443, %v437, %v454
        %v456 = vsel %vm442, %v453, %v455
        %v457 = vshll.u32 %v417, 8
        %v458 = vmul.u32.u64.compose %v457, %v456
        %v459 = vextract.low.u32 %v458
        %v460 = vextract.high.u32 %v458
        %v461 = vmul.u32.u64.compose %v457, %v452
        %v462 = vextract.low.u32 %v461
        %v463 = vextract.high.u32 %v461
        %v464 = vmul.u32 %v457, %v448
        %v465 = vadd.s32 %v460, %v462
        %vm466 = vc.u32 %v460, %v462
        %v467 = vadd.s32 %v463, 1
        %v468 = vsel %vm466, %v467, %v463
        %v469 = vadd.s32 %v464, %v468
        %v470 = vadd.s32 %v469, 536870912
        %v471 = vshrl.u32 %v470, 30
        %v472 = vshll.u32 %v471, 30
        %v473 = vsub.s32 %v469, %v472
        %vm474 = vcmp.lt.s32.totalorder %v473, 0
        %v475 = vsub.s32 0, %v473
        %v476 = vsel %vm474, %v475, %v473
        %v477 = vclz %v476
        %v478 = vsub.s32 %v477, 2
        %vm479 = vcmp.gt.s32.totalorder 0, %v478
        %v480 = vsel %vm479, 0, %v478
        %v481 = vsub.s32 32, %v480
        %v482 = vshll.u32 %v473, %v480
        %v483 = vshrl.u32 %v465, %v481
        %v484 = vor.u32 %v482, %v483
        %v485 = vsub.s32 4294967266, %v480
        %v486 = vadd.s32 %v485, 127
        %v487 = vshll.u32 %v486, 23
        %v488 = vor.u32 4788187, %v487
        %v489 = vand.u32 2147483647, %v488
        %v491 = vcvt.s32.f32 %v484
        %v492 = vmul.f32 %v491, %v489
        %v493 = vxor.u32 %v492, 2147483648
        %v494 = vsel %vm411, %v493, %v492
        %v495 = vsub.s32 4, %v471
        %v496 = vsel %vm411, %v495, %v471
        %v497 = vsel %vm410, %v305, %v494
        %v498 = vsel %vm410, 0, %v496
        %v499 = vcosq.f32.pop %v497
        %v500 = vsinq.f32.pop %v497
        %vm501 = vweird.f32 %v305
        %v502 = vadd.s32 %v498, 3
        %v503 = vand.u32 %v502, 3
        %vm504 = vcmp.lt.s32.totalorder %v503, 2
        %vm505 = vcmp.eq.s32.totalorder %v503, 0
        %v506 = vxor.u32 %v500, 2147483648
        %v507 = vsel %vm505, %v499, %v506
        %vm508 = vcmp.eq.s32.totalorder %v503, 2
        %v509 = vxor.u32 %v499, 2147483648
        %v510 = vsel %vm508, %v509, %v500
        %v511 = vsel %vm504, %v507, %v510
        %v512 = vsel %vm501, nan, %v511
        %v513 = vpack.c.bf16 %v408, %v408
        %v514 = vpack.c.bf16 %v512, %v512
        %v515 = vld [vmem:[#allocation2] sm:$0xf]
        %v516 = vld [vmem:[#allocation2 + $0x4] sm:$0xf]
        %v517 = vld [vmem:[#allocation2 + $0x8] sm:$0xf]
        %v518 = vld [vmem:[#allocation2 + $0xc] sm:$0xf]
        %v519 = vld [vmem:[#allocation2 + $0x10] sm:$0xf]
        %v520 = vld [vmem:[#allocation2 + $0x14] sm:$0xf]
        %v521 = vld [vmem:[#allocation2 + $0x18] sm:$0xf]
        %v522 = vld [vmem:[#allocation2 + $0x1c] sm:$0xf]
        %v523 = vld [vmem:[#allocation2 + $0x20] sm:$0xf]
        %v524 = vld [vmem:[#allocation2 + $0x24] sm:$0xf]
        %v525 = vld [vmem:[#allocation2 + $0x28] sm:$0xf]
        %v526 = vld [vmem:[#allocation2 + $0x2c] sm:$0xf]
        %v527 = vld [vmem:[#allocation2 + $0x30] sm:$0xf]
        %v528 = vld [vmem:[#allocation2 + $0x34] sm:$0xf]
        %v529 = vld [vmem:[#allocation2 + $0x38] sm:$0xf]
        %v530 = vld [vmem:[#allocation2 + $0x3c] sm:$0xf]
        %v531 = vld [vmem:[#allocation2 + $0x40] sm:$0xf]
        %v532 = vld [vmem:[#allocation2 + $0x44] sm:$0xf]
        %v533 = vld [vmem:[#allocation2 + $0x48] sm:$0xf]
        %v534 = vld [vmem:[#allocation2 + $0x4c] sm:$0xf]
        %v535 = vld [vmem:[#allocation2 + $0x50] sm:$0xf]
        %v536 = vld [vmem:[#allocation2 + $0x54] sm:$0xf]
        %v537 = vld [vmem:[#allocation2 + $0x58] sm:$0xf]
        %v538 = vld [vmem:[#allocation2 + $0x5c] sm:$0xf]
        %v539 = vld [vmem:[#allocation2 + $0x60] sm:$0xf]
        %v540 = vld [vmem:[#allocation2 + $0x64] sm:$0xf]
        %v541 = vld [vmem:[#allocation2 + $0x68] sm:$0xf]
        %v542 = vld [vmem:[#allocation2 + $0x6c] sm:$0xf]
        %v543 = vld [vmem:[#allocation2 + $0x70] sm:$0xf]
        %v544 = vld [vmem:[#allocation2 + $0x74] sm:$0xf]
        %v545 = vld [vmem:[#allocation2 + $0x78] sm:$0xf]
        %v546 = vld [vmem:[#allocation2 + $0x7c] sm:$0xf]
        %v547 = vld [vmem:[%s3] sm:$0x1]
        %v549 = vlaneseq
        %v550 = vshrl.u32 %v549, 7
        %v551 = vsub.s32 0, %v550
        %v552 = vrot.slane %v547, %v551
        %v586 = vunpack.c.l.b16 %v515
        %v587 = vunpack.c.l.b16 %v516
        %v588 = vunpack.c.l.b16 %v517
        %v589 = vunpack.c.l.b16 %v518
        %v590 = vunpack.c.l.b16 %v519
        %v591 = vunpack.c.l.b16 %v520
        %v592 = vunpack.c.l.b16 %v521
        %v593 = vunpack.c.l.b16 %v522
        %v594 = vunpack.c.l.b16 %v523
        %v595 = vunpack.c.l.b16 %v524
        %v596 = vunpack.c.l.b16 %v525
        %v597 = vunpack.c.l.b16 %v526
        %v598 = vunpack.c.l.b16 %v527
        %v599 = vunpack.c.l.b16 %v528
        %v600 = vunpack.c.l.b16 %v529
        %v601 = vunpack.c.l.b16 %v530
        %v602 = vunpack.c.l.b16 %v531
        %v603 = vunpack.c.l.b16 %v532
        %v604 = vunpack.c.l.b16 %v533
        %v605 = vunpack.c.l.b16 %v534
        %v606 = vunpack.c.l.b16 %v535
        %v607 = vunpack.c.l.b16 %v536
        %v608 = vunpack.c.l.b16 %v537
        %v609 = vunpack.c.l.b16 %v538
        %v610 = vunpack.c.l.b16 %v539
        %v611 = vunpack.c.l.b16 %v540
        %v612 = vunpack.c.l.b16 %v541
        %v613 = vunpack.c.l.b16 %v542
        %v614 = vunpack.c.l.b16 %v543
        %v615 = vunpack.c.l.b16 %v544
        %v616 = vunpack.c.l.b16 %v545
        %v617 = vunpack.c.l.b16 %v546
        %v618 = vpack.c.b16 %v587, %v586
        %v619 = vpack.c.b16 %v589, %v588
        %v620 = vpack.c.b16 %v591, %v590
        %v621 = vpack.c.b16 %v593, %v592
        %v622 = vpack.c.b16 %v595, %v594
        %v623 = vpack.c.b16 %v597, %v596
        %v624 = vpack.c.b16 %v599, %v598
        %v625 = vpack.c.b16 %v601, %v600
        %v626 = vpack.c.b16 %v603, %v602
        %v627 = vpack.c.b16 %v605, %v604
        %v628 = vpack.c.b16 %v607, %v606
        %v629 = vpack.c.b16 %v609, %v608
        %v630 = vpack.c.b16 %v611, %v610
        %v631 = vpack.c.b16 %v613, %v612
        %v632 = vpack.c.b16 %v615, %v614
        %v633 = vpack.c.b16 %v617, %v616
        %650 = vmatprep.subr.bf16.mxu0 0
        %651 = vmatpush1.bf16.msra.mxu0 %v625
        %652 = vmatprep.subr.bf16.mxu0 0
        %653 = vmatpush1.bf16.msra.mxu0 %v624
        %654 = vmatprep.subr.bf16.mxu0 0
        %655 = vmatpush1.bf16.msra.mxu0 %v623
        %656 = vmatprep.subr.bf16.mxu0 0
        %657 = vmatpush1.bf16.msra.mxu0 %v622
        %658 = vmatprep.subr.bf16.mxu0 0
        %659 = vmatpush1.bf16.msra.mxu0 %v621
        %660 = vmatprep.subr.bf16.mxu0 0
        %661 = vmatpush1.bf16.msra.mxu0 %v620
        %662 = vmatprep.subr.bf16.mxu0 0
        %663 = vmatpush1.bf16.msra.mxu0 %v619
        %664 = vmatprep.subr.bf16.mxu0 0
        %665 = vmatpush1.bf16.msra.mxu0 %v618
        %666 = vmatprep.subr.bf16.mxu0 0
        %667 = vmatpush2.bf16.msra.mxu0 %v633
        %668 = vmatprep.subr.bf16.mxu0 0
        %669 = vmatpush2.bf16.msra.mxu0 %v632
        %670 = vmatprep.subr.bf16.mxu0 0
        %671 = vmatpush2.bf16.msra.mxu0 %v631
        %672 = vmatprep.subr.bf16.mxu0 0
        %673 = vmatpush2.bf16.msra.mxu0 %v630
        %674 = vmatprep.subr.bf16.mxu0 0
        %675 = vmatpush2.bf16.msra.mxu0 %v629
        %676 = vmatprep.subr.bf16.mxu0 0
        %677 = vmatpush2.bf16.msra.mxu0 %v628
        %678 = vmatprep.subr.bf16.mxu0 0
        %679 = vmatpush2.bf16.msra.mxu0 %v627
        %680 = vmatprep.subr.bf16.mxu0 0
        %681 = vmatpush2.bf16.msra.mxu0 %v626
        %682 = vmatprep.mubr.bf16.mxu0 %v514
        %683 = vmatmul.mubr.bf16.gmra.mxu0 %v513
        %v684 = vpop.f32.mrf.mxu0
        %v685 = vadd.f32 %v552, %v684
        %v686 = vpop.f32.mrf.mxu0
        %v687 = vpop.f32.mrf.mxu0
        %v688 = vpop.f32.mrf.mxu0
        %689 = vdwg.mxu0
        %v690 = vxor.u32 %v685, 2147483648
        %v691 = vmul.f32 %v690, 1.442695
        %v692 = vpow.pop %v691
        %v693 = vadd.f32 %v692, 1.0
        %v694 = vrcp.pop %v693
        %v695 = vmul.f32 1.0, %v694
        %v696 = vmul.f32 %v685, %v695
        %v697 = vpack.c.bf16 %v696, %v696
        %v698 = vld [vmem:[#allocation5] sm:$0xf]
        %v699 = vld [vmem:[#allocation5 + $0x4] sm:$0xf]
        %v700 = vld [vmem:[#allocation5 + $0x8] sm:$0xf]
        %v701 = vld [vmem:[#allocation5 + $0xc] sm:$0xf]
        %v702 = vld [vmem:[#allocation5 + $0x10] sm:$0xf]
        %v703 = vld [vmem:[#allocation5 + $0x14] sm:$0xf]
        %v704 = vld [vmem:[#allocation5 + $0x18] sm:$0xf]
        %v705 = vld [vmem:[#allocation5 + $0x1c] sm:$0xf]
        %v706 = vld [vmem:[#allocation5 + $0x20] sm:$0xf]
        %v707 = vld [vmem:[#allocation5 + $0x24] sm:$0xf]
        %v708 = vld [vmem:[#allocation5 + $0x28] sm:$0xf]
        %v709 = vld [vmem:[#allocation5 + $0x2c] sm:$0xf]
        %v710 = vld [vmem:[#allocation5 + $0x30] sm:$0xf]
        %v711 = vld [vmem:[#allocation5 + $0x34] sm:$0xf]
        %v712 = vld [vmem:[#allocation5 + $0x38] sm:$0xf]
        %v713 = vld [vmem:[#allocation5 + $0x3c] sm:$0xf]
        %v714 = vld [vmem:[%s5] sm:$0x1]
        %v716 = vlaneseq
        %v717 = vshrl.u32 %v716, 7
        %v718 = vsub.s32 0, %v717
        %v719 = vrot.slane %v714, %v718
        %v737 = vunpack.c.l.b16 %v698
        %v738 = vunpack.c.l.b16 %v699
        %v739 = vunpack.c.l.b16 %v700
        %v740 = vunpack.c.l.b16 %v701
        %v741 = vunpack.c.l.b16 %v702
        %v742 = vunpack.c.l.b16 %v703
        %v743 = vunpack.c.l.b16 %v704
        %v744 = vunpack.c.l.b16 %v705
        %v745 = vunpack.c.l.b16 %v706
        %v746 = vunpack.c.l.b16 %v707
        %v747 = vunpack.c.l.b16 %v708
        %v748 = vunpack.c.l.b16 %v709
        %v749 = vunpack.c.l.b16 %v710
        %v750 = vunpack.c.l.b16 %v711
        %v751 = vunpack.c.l.b16 %v712
        %v752 = vunpack.c.l.b16 %v713
        %v753 = vpack.c.b16 %v738, %v737
        %v754 = vpack.c.b16 %v740, %v739
        %v755 = vpack.c.b16 %v742, %v741
        %v756 = vpack.c.b16 %v744, %v743
        %v757 = vpack.c.b16 %v746, %v745
        %v758 = vpack.c.b16 %v748, %v747
        %v759 = vpack.c.b16 %v750, %v749
        %v760 = vpack.c.b16 %v752, %v751
        %769 = vmatprep.subr.bf16.mxu0 0
        %770 = vmatpush1.bf16.msra.mxu0 %v760
        %771 = vmatprep.subr.bf16.mxu0 0
        %772 = vmatpush1.bf16.msra.mxu0 %v759
        %773 = vmatprep.subr.bf16.mxu0 0
        %774 = vmatpush1.bf16.msra.mxu0 %v758
        %775 = vmatprep.subr.bf16.mxu0 0
        %776 = vmatpush1.bf16.msra.mxu0 %v757
        %777 = vmatprep.subr.bf16.mxu0 0
        %778 = vmatpush1.bf16.msra.mxu0 %v756
        %779 = vmatprep.subr.bf16.mxu0 0
        %780 = vmatpush1.bf16.msra.mxu0 %v755
        %781 = vmatprep.subr.bf16.mxu0 0
        %782 = vmatpush1.bf16.msra.mxu0 %v754
        %783 = vmatprep.subr.bf16.mxu0 0
        %784 = vmatpush1.bf16.msra.mxu0 %v753
        %785 = vmatprep.subr.bf16.mxu0 0
        %786 = vmatpush2.bf16.msra.mxu0 0
        %787 = vmatprep.subr.bf16.mxu0 0
        %788 = vmatpush2.bf16.msra.mxu0 0
        %789 = vmatprep.subr.bf16.mxu0 0
        %790 = vmatpush2.bf16.msra.mxu0 0
        %791 = vmatprep.subr.bf16.mxu0 0
        %792 = vmatpush2.bf16.msra.mxu0 0
        %793 = vmatprep.subr.bf16.mxu0 0
        %794 = vmatpush2.bf16.msra.mxu0 0
        %795 = vmatprep.subr.bf16.mxu0 0
        %796 = vmatpush2.bf16.msra.mxu0 0
        %797 = vmatprep.subr.bf16.mxu0 0
        %798 = vmatpush2.bf16.msra.mxu0 0
        %799 = vmatprep.subr.bf16.mxu0 0
        %800 = vmatpush2.bf16.msra.mxu0 0
        %801 = vmatprep.mubr.bf16.mxu0 0
        %802 = vmatmul.mubr.bf16.gmra.mxu0 %v697
        %v803 = vpop.f32.mrf.mxu0
        %v804 = vadd.f32 %v719, %v803
        %v805 = vpop.f32.mrf.mxu0
        %v806 = vpop.f32.mrf.mxu0
        %v807 = vpop.f32.mrf.mxu0
        %808 = vdwg.mxu0
        %809 = vst [vmem:[%s286] sm:$0xff] %v804
        %s810 = sand.u32 %s175, 1
        %s811 = scalar_lea.sflag [#allocation4], %s810
        %s812 = sand.u32 %s175, 1
        %s813 = smul.addr %s812, 8
        %s814 = scalar_lea.vmem [#allocation7], %s813
        // Predicated region
        $region53: #{tpu_custom_call.1} parent=43 // pred_check
          %p815 = pneg %p185
        $region54: #{tpu_custom_call.1} parent=43 // pred_check_branch
          %817 = sbr.rel (%p815) target = $region56
        $region55: #{tpu_custom_call.1} parent=43 // pred_region
          %s819 = ssub.s32 128, 128
          %820 = vsyncadd %s811, %s819
          %s821 = sadd.s32 %s27, %s26
          %s822 = smul.addr %s821, 128
          %s823 = scalar_lea.hbm %s6, %s822
          %s825 = sshll.u32 %s814, 4
          %s826 = int_to_ptr.vmem [resolvable:$true] %s825
          %828 = dma.vmem_to_hbm [thread:$0]  %s826, 128, %s823, %s811
        $region56: #{tpu_custom_call.1} parent=43 // pred_fallthru
          _
      $region44: #{tpu_custom_call.1} parent=5 // pred_fallthru
        _
      %p829 = scmp.le.s32.totalorder 2, %s17
      // Predicated region
      $region57: #{tpu_custom_call.1} parent=5 // pred_check
        %p830 = pneg %p829
      $region58: #{tpu_custom_call.1} parent=5 // pred_check_branch
        %832 = sbr.rel (%p830) target = $region60
      $region59: #{tpu_custom_call.1} parent=5 // pred_region
        %s833 = ssub.s32 %s17, 2
        // Predicated region
        $region61: #{tpu_custom_call.1} parent=59 // pred_check
          %p834 = pneg %p191
        $region62: #{tpu_custom_call.1} parent=59 // pred_check_branch
          %836 = sbr.rel (%p834) target = $region64
        $region63: #{tpu_custom_call.1} parent=59 // pred_region
          %s837 = sand.u32 %s176, 1
          %s838 = scalar_lea.sflag [#allocation4], %s837
          %s839 = sand.u32 %s176, 1
          %s840 = smul.addr %s839, 8
          %s841 = scalar_lea.vmem [#allocation7], %s840
          %842 = dma.done %s838, 128
        $region64: #{tpu_custom_call.1} parent=59 // pred_fallthru
          _
      $region60: #{tpu_custom_call.1} parent=5 // pred_fallthru
        _
    $region6: #{tpu_custom_call.1} parent=1 // loop_footer
      %s21 = sadd.s32 1, %s17
    $region7: #{tpu_custom_call.1} parent=1 // loop_footer_branch
      %16 = sbr.rel target = $region3
    $region8: #{tpu_custom_call.1} parent=1 // loop_exit
      _
    %843 = vsyncpa [#allocation3], 1
    %s844 = scalar_lea.sflag [#allocation3], 1
    %845 = vsyncpa %s844, 1
    %846 = vsyncpa [#allocation6], 1
    %847 = vsyncpa [#allocation4], 1
    %s848 = scalar_lea.sflag [#allocation4], 1
    %849 = vsyncpa %s848, 1

// kernel: tpu_custom_call.1
$region0: #{tpu_custom_call.1}
  #allocation0 [shape = 'u32[]', space=smem, size = 0x4, offset = 0x4, fixed_abs, tag = 'smem constant byte address 0x4 - core index']
  #allocation1 [shape = 'u32[144,128]{1,0:T(1,128)}', space=vmem, size = 0x12000, scoped, tag = 'internal scratch']
  %s0 = inlined_call_operand.vmem [shape: f32[24,1], index: 0, kind: input, shape index: {}]
  %s1 = inlined_call_operand.vmem [shape: f32[1,128], index: 1, kind: input, shape index: {}]
  %s2 = inlined_call_operand.hbm [shape: bf16[256,128], index: 2, kind: input, shape index: {}]
  %s3 = inlined_call_operand.vmem [shape: f32[1,128], index: 3, kind: input, shape index: {}]
  %s4 = inlined_call_operand.hbm [shape: bf16[128,128], index: 4, kind: input, shape index: {}]
  %s5 = inlined_call_operand.vmem [shape: f32[1,128], index: 5, kind: input, shape index: {}]
  %s6 = inlined_call_operand.hbm [shape: f32[24,128], index: 6, kind: output, shape index: {}]
  %s7 = sld [smem:[#allocation0]]
  $region65: #{tpu_custom_call.1} parent=0
    _
  %s9 = ssub.s32 1, %s7
  %s10 = scalar_select 0, %s9, %s7
  $region1: #{tpu_custom_call.1} parent=0
    #allocation2 [shape = 'u8[65536]{0}', space=vmem, size = 0x10000, scoped, tag = 'input window, operand 2, single buffered']
    #allocation3 [shape = 's32[2]{0}', space=sflag, size = 0x8, scoped, tag = 'scoped memory for tpu_custom_call.1']
    #allocation4 [shape = 's32[2]{0}', space=sflag, size = 0x8, scoped, tag = 'scoped memory for tpu_custom_call.1']
    #allocation5 [shape = 'u8[32768]{0}', space=vmem, size = 0x8000, scoped, tag = 'input window, operand 4, single buffered']
    #allocation6 [shape = 's32[1]{0}', space=sflag, size = 0x4, scoped, tag = 'scoped memory for tpu_custom_call.1']
    #allocation7 [shape = 'u8[8192]{0}', space=vmem, size = 0x2000, scoped, tag = 'output window, operand 0']
    %11 = vsyncpa [#allocation3], 0
    %12 = vsyncpa [#allocation6], 0
    %13 = vsyncpa [#allocation4], 0
    %s14 = scalar_lea.sflag [#allocation4], 1
    %15 = vsyncpa %s14, 0
    loop: start=0, step=1, limit=5
    $region2: #{tpu_custom_call.1} parent=1 // loop_pre_header
      _
    $region3: #{tpu_custom_call.1} parent=1 // loop_header
      %s17 = sphi 0, %s21
      %p18 = scmp.ge.s32.totalorder %s17, 5
      %s24 = sphi 0, %s36
      %s25 = sphi 0, %s32
      %s26 = sphi 0, %s24
      %s27 = sphi 0, %s25
      %s28 = sphi 0, %s26
      %s29 = sphi 0, %s27
      %s39 = sphi 0, %s41
      %s42 = sphi 0, %s39
      %s43 = sphi 0, %s42
      %s59 = sphi 0, %s43
      %s63 = sphi 0, %s63
      %s65 = sphi 0, %s63
      %s66 = sphi 0, %s65
      %s80 = sphi 0, %s66
      %s84 = sphi 0, %s84
      %s86 = sphi 0, %s84
      %s87 = sphi 0, %s86
      %s101 = sphi 0, %s87
      %s105 = sphi 0, %s105
      %s107 = sphi 0, %s105
      %s108 = sphi 0, %s107
      %s122 = sphi 0, %s108
      %s126 = sphi 0, %s126
      %s128 = sphi 0, %s126
      %s129 = sphi 0, %s128
      %s143 = sphi 0, %s129
      %s147 = sphi 0, %s147
      %s149 = sphi 0, %s147
      %s150 = sphi 0, %s149
      %s164 = sphi 0, %s150
      %s172 = sphi 0, %s174
      %s175 = sphi 0, %s172
      %s176 = sphi 0, %s175
      %s192 = sphi 0, %s176
    $region4: #{tpu_custom_call.1} parent=1 // loop_header_branch
      %20 = sbr.rel (%p18) target = $region8
    $region5: #{tpu_custom_call.1} parent=1 // loop_body
      %s22 = ssub.s32 %s17, 1
      %s23 = ssub.s32 %s17, 2
      %s30 = sadd.s32 1, %s25
      %p31 = scmp.ge.s32.totalorder %s30, 1
      %s32 = scalar_select %p31, 0, %s30
      %s33 = sadd.s32 1, %s24
      %s34 = scalar_select %p31, %s33, %s24
      %p35 = scmp.ge.s32.totalorder %s34, 3
      %s36 = scalar_select %p35, 0, %s34
      %s37 = ssub.s32 %s24, %s36
      %p38 = scmp.eq.s32.totalorder %s37, 0
      %s40 = sadd.s32 %s39, 1
      %s41 = scalar_select %p38, %s39, %s40
      %p44 = pneg %p38
      %p45 = scmp.eq.s32.totalorder %s17, 2
      %p46 = por %p44, %p45
      %p47 = scmp.ne.s32.totalorder %s39, %s42
      %p48 = scmp.eq.s32.totalorder %s17, 0
      %p49 = por %p47, %p48
      %p50 = scmp.ne.s32.totalorder %s39, %s42
      %p51 = scmp.eq.s32.totalorder %s22, 2
      %p52 = por %p50, %p51
      %p53 = scmp.ne.s32.totalorder %s42, %s43
      %p54 = scmp.eq.s32.totalorder %s22, 0
      %p55 = por %p53, %p54
      %p56 = scmp.ne.s32.totalorder %s42, %s43
      %p57 = scmp.eq.s32.totalorder %s23, 2
      %p58 = por %p56, %p57
      %p60 = scmp.ne.s32.totalorder %s43, %s59
      %p61 = scmp.eq.s32.totalorder %s23, 0
      %p62 = por %p60, %p61
      %s64 = sadd.s32 %s63, 1
      %p67 = scmp.eq.s32.totalorder %s17, 2
      %p68 = scmp.ne.s32.totalorder %s63, %s65
      %p69 = scmp.eq.s32.totalorder %s17, 0
      %p70 = por %p68, %p69
      %p71 = scmp.ne.s32.totalorder %s63, %s65
      %p72 = scmp.eq.s32.totalorder %s22, 2
      %p73 = por %p71, %p72
      %p74 = scmp.ne.s32.totalorder %s65, %s66
      %p75 = scmp.eq.s32.totalorder %s22, 0
      %p76 = por %p74, %p75
      %p77 = scmp.ne.s32.totalorder %s65, %s66
      %p78 = scmp.eq.s32.totalorder %s23, 2
      %p79 = por %p77, %p78
      %p81 = scmp.ne.s32.totalorder %s66, %s80
      %p82 = scmp.eq.s32.totalorder %s23, 0
      %p83 = por %p81, %p82
      %s85 = sadd.s32 %s84, 1
      %p88 = scmp.eq.s32.totalorder %s17, 2
      %p89 = scmp.ne.s32.totalorder %s84, %s86
      %p90 = scmp.eq.s32.totalorder %s17, 0
      %p91 = por %p89, %p90
      %p92 = scmp.ne.s32.totalorder %s84, %s86
      %p93 = scmp.eq.s32.totalorder %s22, 2
      %p94 = por %p92, %p93
      %p95 = scmp.ne.s32.totalorder %s86, %s87
      %p96 = scmp.eq.s32.totalorder %s22, 0
      %p97 = por %p95, %p96
      %p98 = scmp.ne.s32.totalorder %s86, %s87
      %p99 = scmp.eq.s32.totalorder %s23, 2
      %p100 = por %p98, %p99
      %p102 = scmp.ne.s32.totalorder %s87, %s101
      %p103 = scmp.eq.s32.totalorder %s23, 0
      %p104 = por %p102, %p103
      %s106 = sadd.s32 %s105, 1
      %p109 = scmp.eq.s32.totalorder %s17, 2
      %p110 = scmp.ne.s32.totalorder %s105, %s107
      %p111 = scmp.eq.s32.totalorder %s17, 0
      %p112 = por %p110, %p111
      %p113 = scmp.ne.s32.totalorder %s105, %s107
      %p114 = scmp.eq.s32.totalorder %s22, 2
      %p115 = por %p113, %p114
      %p116 = scmp.ne.s32.totalorder %s107, %s108
      %p117 = scmp.eq.s32.totalorder %s22, 0
      %p118 = por %p116, %p117
      %p119 = scmp.ne.s32.totalorder %s107, %s108
      %p120 = scmp.eq.s32.totalorder %s23, 2
      %p121 = por %p119, %p120
      %p123 = scmp.ne.s32.totalorder %s108, %s122
      %p124 = scmp.eq.s32.totalorder %s23, 0
      %p125 = por %p123, %p124
      %s127 = sadd.s32 %s126, 1
      %p130 = scmp.eq.s32.totalorder %s17, 2
      %p131 = scmp.ne.s32.totalorder %s126, %s128
      %p132 = scmp.eq.s32.totalorder %s17, 0
      %p133 = por %p131, %p132
      %p134 = scmp.ne.s32.totalorder %s126, %s128
      %p135 = scmp.eq.s32.totalorder %s22, 2
      %p136 = por %p134, %p135
      %p137 = scmp.ne.s32.totalorder %s128, %s129
      %p138 = scmp.eq.s32.totalorder %s22, 0
      %p139 = por %p137, %p138
      %p140 = scmp.ne.s32.totalorder %s128, %s129
      %p141 = scmp.eq.s32.totalorder %s23, 2
      %p142 = por %p140, %p141
      %p144 = scmp.ne.s32.totalorder %s129, %s143
      %p145 = scmp.eq.s32.totalorder %s23, 0
      %p146 = por %p144, %p145
      %s148 = sadd.s32 %s147, 1
      %p151 = scmp.eq.s32.totalorder %s17, 2
      %p152 = scmp.ne.s32.totalorder %s147, %s149
      %p153 = scmp.eq.s32.totalorder %s17, 0
      %p154 = por %p152, %p153
      %p155 = scmp.ne.s32.totalorder %s147, %s149
      %p156 = scmp.eq.s32.totalorder %s22, 2
      %p157 = por %p155, %p156
      %p158 = scmp.ne.s32.totalorder %s149, %s150
      %p159 = scmp.eq.s32.totalorder %s22, 0
      %p160 = por %p158, %p159
      %p161 = scmp.ne.s32.totalorder %s149, %s150
      %p162 = scmp.eq.s32.totalorder %s23, 2
      %p163 = por %p161, %p162
      %p165 = scmp.ne.s32.totalorder %s150, %s164
      %p166 = scmp.eq.s32.totalorder %s23, 0
      %p167 = por %p165, %p166
      %s168 = ssub.s32 %s24, %s36
      %s169 = ssub.s32 %s25, %s32
      %s170 = sor.u32 %s168, %s169
      %p171 = scmp.eq.s32.totalorder %s170, 0
      %s173 = sadd.s32 %s172, 1
      %s174 = scalar_select %p171, %s172, %s173
      %p177 = pneg %p171
      %p178 = scmp.eq.s32.totalorder %s17, 2
      %p179 = por %p177, %p178
      %p180 = scmp.ne.s32.totalorder %s172, %s175
      %p181 = scmp.eq.s32.totalorder %s17, 0
      %p182 = por %p180, %p181
      %p183 = scmp.ne.s32.totalorder %s172, %s175
      %p184 = scmp.eq.s32.totalorder %s22, 2
      %p185 = por %p183, %p184
      %p186 = scmp.ne.s32.totalorder %s175, %s176
      %p187 = scmp.eq.s32.totalorder %s22, 0
      %p188 = por %p186, %p187
      %p189 = scmp.ne.s32.totalorder %s175, %s176
      %p190 = scmp.eq.s32.totalorder %s23, 2
      %p191 = por %p189, %p190
      %p193 = scmp.ne.s32.totalorder %s176, %s192
      %p194 = scmp.eq.s32.totalorder %s23, 0
      %p195 = por %p193, %p194
      %p196 = scmp.le.s32.totalorder 1, %s17
      %p197 = scmp.lt.s32.totalorder %s17, 4
      %p198 = pnand %p196, %p197
      %p199 = pneg %p198
      // Predicated region
      $region9: #{tpu_custom_call.1} parent=5 // pred_check
        _
      $region10: #{tpu_custom_call.1} parent=5 // pred_check_branch
        %201 = sbr.rel (%p198) target = $region12
      $region11: #{tpu_custom_call.1} parent=5 // pred_region
        %s202 = ssub.s32 %s17, 1
        // Predicated region
        $region13: #{tpu_custom_call.1} parent=11 // pred_check
          %p203 = pneg %p76
        $region14: #{tpu_custom_call.1} parent=11 // pred_check_branch
          %205 = sbr.rel (%p203) target = $region16
        $region15: #{tpu_custom_call.1} parent=11 // pred_region
          _
        $region16: #{tpu_custom_call.1} parent=11 // pred_fallthru
          _
        // Predicated region
        $region17: #{tpu_custom_call.1} parent=11 // pred_check
          %p206 = pneg %p97
        $region18: #{tpu_custom_call.1} parent=11 // pred_check_branch
          %208 = sbr.rel (%p206) target = $region20
        $region19: #{tpu_custom_call.1} parent=11 // pred_region
          %s210 = ssub.s32 2048, 2048
          %211 = vsyncadd [#allocation3], %s210
          %s212 = sshll.u32 [#allocation2], 4
          %s213 = int_to_ptr.vmem [resolvable:$true] %s212
          %218 = dma.hbm_to_vmem [thread:$0]  %s2, 2048, %s213, [#allocation3], 64, 64, 4
        $region20: #{tpu_custom_call.1} parent=11 // pred_fallthru
          _
        // Predicated region
        $region21: #{tpu_custom_call.1} parent=11 // pred_check
          %p219 = pneg %p118
        $region22: #{tpu_custom_call.1} parent=11 // pred_check_branch
          %221 = sbr.rel (%p219) target = $region24
        $region23: #{tpu_custom_call.1} parent=11 // pred_region
          _
        $region24: #{tpu_custom_call.1} parent=11 // pred_fallthru
          _
        // Predicated region
        $region25: #{tpu_custom_call.1} parent=11 // pred_check
          %p222 = pneg %p139
        $region26: #{tpu_custom_call.1} parent=11 // pred_check_branch
          %224 = sbr.rel (%p222) target = $region28
        $region27: #{tpu_custom_call.1} parent=11 // pred_region
          %s226 = ssub.s32 1024, 1024
          %227 = vsyncadd [#allocation6], %s226
          %s228 = sshll.u32 [#allocation5], 4
          %s229 = int_to_ptr.vmem [resolvable:$true] %s228
          %234 = dma.hbm_to_vmem [thread:$0]  %s4, 1024, %s229, [#allocation6], 64, 64, 4
        $region28: #{tpu_custom_call.1} parent=11 // pred_fallthru
          _
        // Predicated region
        $region29: #{tpu_custom_call.1} parent=11 // pred_check
          %p235 = pneg %p160
        $region30: #{tpu_custom_call.1} parent=11 // pred_check_branch
          %237 = sbr.rel (%p235) target = $region32
        $region31: #{tpu_custom_call.1} parent=11 // pred_region
          _
        $region32: #{tpu_custom_call.1} parent=11 // pred_fallthru
          _
      $region12: #{tpu_custom_call.1} parent=5 // pred_fallthru
        _
      %p238 = scmp.lt.s32.totalorder %s17, 3
      // Predicated region
      $region33: #{tpu_custom_call.1} parent=5 // pred_check
        %p239 = pneg %p238
      $region34: #{tpu_custom_call.1} parent=5 // pred_check_branch
        %241 = sbr.rel (%p239) target = $region36
      $region35: #{tpu_custom_call.1} parent=5 // pred_region
        // Predicated region
        $region37: #{tpu_custom_call.1} parent=35 // pred_check
          %p242 = pneg %p49
        $region38: #{tpu_custom_call.1} parent=35 // pred_check_branch
          %244 = sbr.rel (%p242) target = $region40
        $region39: #{tpu_custom_call.1} parent=35 // pred_region
          %p245 = scmp.lt.s32.totalorder %s24, 2
          %s246 = scalar_select %p245, %s24, 2
          %s247 = smul.addr %s246, 8
          %s248 = scalar_lea.vmem %s0, %s247
        $region40: #{tpu_custom_call.1} parent=35 // pred_fallthru
          _
      $region36: #{tpu_custom_call.1} parent=5 // pred_fallthru
        _
      %p249 = scmp.le.s32.totalorder 1, %s17
      %p250 = scmp.lt.s32.totalorder %s17, 4
      %p251 = pnand %p249, %p250
      %p252 = pneg %p251
      // Predicated region
      $region41: #{tpu_custom_call.1} parent=5 // pred_check
        _
      $region42: #{tpu_custom_call.1} parent=5 // pred_check_branch
        %254 = sbr.rel (%p251) target = $region44
      $region43: #{tpu_custom_call.1} parent=5 // pred_region
        %s255 = ssub.s32 %s17, 1
        // Predicated region
        $region45: #{tpu_custom_call.1} parent=43 // pred_check
          %p256 = pneg %p97
        $region46: #{tpu_custom_call.1} parent=43 // pred_check_branch
          %258 = sbr.rel (%p256) target = $region48
        $region47: #{tpu_custom_call.1} parent=43 // pred_region
          %259 = dma.done [#allocation3], 2048
        $region48: #{tpu_custom_call.1} parent=43 // pred_fallthru
          _
        // Predicated region
        $region49: #{tpu_custom_call.1} parent=43 // pred_check
          %p260 = pneg %p139
        $region50: #{tpu_custom_call.1} parent=43 // pred_check_branch
          %262 = sbr.rel (%p260) target = $region52
        $region51: #{tpu_custom_call.1} parent=43 // pred_region
          %263 = dma.done [#allocation6], 1024
        $region52: #{tpu_custom_call.1} parent=43 // pred_fallthru
          _
        %p264 = scmp.lt.s32.totalorder %s26, 2
        %s265 = scalar_select %p264, %s26, 2
        %s266 = smul.addr %s265, 8
        %s267 = scalar_lea.vmem %s0, %s266
        %p268 = pneg %p55
        %p269 = pneg %p52
        %p270 = pneg %p76
        %p271 = pneg %p73
        %p272 = pneg %p97
        %p273 = pneg %p94
        %p274 = pneg %p118
        %p275 = pneg %p115
        %p276 = pneg %p139
        %p277 = pneg %p136
        %p278 = pneg %p160
        %p279 = pneg %p157
        %p280 = pneg %p188
        %p281 = pneg %p185
        %s282 = sand.u32 %s175, 1
        %s283 = scalar_lea.sflag [#allocation4], %s282
        %s284 = sand.u32 %s175, 1
        %s285 = smul.addr %s284, 8
        %s286 = scalar_lea.vmem [#allocation7], %s285
        %p287 = scmp.lt.s32.totalorder %s26, 2
        %s288 = scalar_select %p287, %s26, 2
        %s289 = smul.addr %s288, 8
        %s290 = scalar_lea.vmem %s0, %s289
        %v292 = vld [vmem:[%s290] sm:$0xff]
        %v293 = vld [vmem:[%s1] sm:$0x1]
        %295 = vset.pattern.permute.xlu0 0
        %296 = vperm.xlu0 %295, %v292
        %v297 = vpop.permute.xlu0 %296
        %v300 = vlaneseq
        %v301 = vshrl.u32 %v300, 7
        %v302 = vsub.s32 0, %v301
        %v303 = vrot.slane %v293, %v302
        %v305 = vmul.f32 %v297, %v303
        %v306 = vand.u32 2147483647, %v305
        %vm307 = vcmp.le.f32.partialorder %v306, 0.7853982
        %vm308 = vcmp.lt.s32.totalorder %v305, 0
        %v309 = vand.u32 %v305, 2139095040
        %v310 = vshrl.u32 %v309, 23
        %v311 = vsub.s32 %v310, 127
        %v312 = vand.u32 2147483647, %v305
        %v313 = vand.u32 %v312, 8388607
        %v314 = vor.u32 %v313, 8388608
        %v315 = vsub.s32 0, %v314
        %v316 = vadd.s32 %v311, 1
        %vm317 = vcmp.gt.s32.totalorder %v316, 0
        %v318 = vsel %vm317, %v316, 0
        %v319 = vshrl.u32 %v318, 5
        %v320 = vand.u32 %v318, 31
        %v321 = vsub.s32 32, %v320
        %v322 = vshrl.u32 683565275, %v321
        %v323 = vshll.u32 683565275, %v320
        %v324 = vshrl.u32 2475754826, %v321
        %v325 = vor.u32 %v323, %v324
        %v326 = vshll.u32 2475754826, %v320
        %v327 = vshrl.u32 2131351028, %v321
        %v328 = vor.u32 %v326, %v327
        %v329 = vshll.u32 2131351028, %v320
        %v330 = vshrl.u32 2102212464, %v321
        %v331 = vor.u32 %v329, %v330
        %v332 = vshll.u32 2102212464, %v320
        %v333 = vshrl.u32 920167782, %v321
        %v334 = vor.u32 %v332, %v333
        %v335 = vshll.u32 920167782, %v320
        %v336 = vshrl.u32 1326507024, %v321
        %v337 = vor.u32 %v335, %v336
        %vm338 = vcmp.lt.s32.totalorder %v319, 1
        %vm339 = vcmp.lt.s32.totalorder %v319, 2
        %vm340 = vcmp.lt.s32.totalorder %v319, 3
        %vm341 = vcmp.lt.s32.totalorder %v319, 4
        %v342 = vsel %vm338, %v322, %v325
        %v343 = vsel %vm341, %v331, 2102212464
        %v344 = vsel %vm340, %v328, %v343
        %v345 = vsel %vm339, %v342, %v344
        %v346 = vsel %vm338, %v325, %v328
        %v347 = vsel %vm341, %v334, 920167782
        %v348 = vsel %vm340, %v331, %v347
        %v349 = vsel %vm339, %v346, %v348
        %v350 = vsel %vm338, %v328, %v331
        %v351 = vsel %vm341, %v337, 1326507024
        %v352 = vsel %vm340, %v334, %v351
        %v353 = vsel %vm339, %v350, %v352
        %v354 = vshll.u32 %v314, 8
        %v355 = vmul.u32.u64.compose %v354, %v353
        %v356 = vextract.low.u32 %v355
        %v357 = vextract.high.u32 %v355
        %v358 = vmul.u32.u64.compose %v354, %v349
        %v359 = vextract.low.u32 %v358
        %v360 = vextract.high.u32 %v358
        %v361 = vmul.u32 %v354, %v345
        %v362 = vadd.s32 %v357, %v359
        %vm363 = vc.u32 %v357, %v359
        %v364 = vadd.s32 %v360, 1
        %v365 = vsel %vm363, %v364, %v360
        %v366 = vadd.s32 %v361, %v365
        %v367 = vadd.s32 %v366, 536870912
        %v368 = vshrl.u32 %v367, 30
        %v369 = vshll.u32 %v368, 30
        %v370 = vsub.s32 %v366, %v369
        %vm371 = vcmp.lt.s32.totalorder %v370, 0
        %v372 = vsub.s32 0, %v370
        %v373 = vsel %vm371, %v372, %v370
        %v374 = vclz %v373
        %v375 = vsub.s32 %v374, 2
        %vm376 = vcmp.gt.s32.totalorder 0, %v375
        %v377 = vsel %vm376, 0, %v375
        %v378 = vsub.s32 32, %v377
        %v379 = vshll.u32 %v370, %v377
        %v380 = vshrl.u32 %v362, %v378
        %v381 = vor.u32 %v379, %v380
        %v382 = vsub.s32 4294967266, %v377
        %v383 = vadd.s32 %v382, 127
        %v384 = vshll.u32 %v383, 23
        %v385 = vor.u32 4788187, %v384
        %v386 = vand.u32 2147483647, %v385
        %v388 = vcvt.s32.f32 %v381
        %v389 = vmul.f32 %v388, %v386
        %v390 = vxor.u32 %v389, 2147483648
        %v391 = vsel %vm308, %v390, %v389
        %v392 = vsub.s32 4, %v368
        %v393 = vsel %vm308, %v392, %v368
        %v394 = vsel %vm307, %v305, %v391
        %v395 = vsel %vm307, 0, %v393
        %v396 = vcosq.f32.pop %v394
        %v397 = vsinq.f32.pop %v394
        %vm398 = vweird.f32 %v305
        %v399 = vand.u32 %v395, 3
        %vm400 = vcmp.lt.s32.totalorder %v399, 2
        %vm401 = vcmp.eq.s32.totalorder %v399, 0
        %v402 = vxor.u32 %v397, 2147483648
        %v403 = vsel %vm401, %v396, %v402
        %vm404 = vcmp.eq.s32.totalorder %v399, 2
        %v405 = vxor.u32 %v396, 2147483648
        %v406 = vsel %vm404, %v405, %v397
        %v407 = vsel %vm400, %v403, %v406
        %v408 = vsel %vm398, nan, %v407
        %v409 = vand.u32 2147483647, %v305
        %vm410 = vcmp.le.f32.partialorder %v409, 0.7853982
        %vm411 = vcmp.lt.s32.totalorder %v305, 0
        %v412 = vand.u32 %v305, 2139095040
        %v413 = vshrl.u32 %v412, 23
        %v414 = vsub.s32 %v413, 127
        %v415 = vand.u32 2147483647, %v305
        %v416 = vand.u32 %v415, 8388607
        %v417 = vor.u32 %v416, 8388608
        %v418 = vsub.s32 0, %v417
        %v419 = vadd.s32 %v414, 1
        %vm420 = vcmp.gt.s32.totalorder %v419, 0
        %v421 = vsel %vm420, %v419, 0
        %v422 = vshrl.u32 %v421, 5
        %v423 = vand.u32 %v421, 31
        %v424 = vsub.s32 32, %v423
        %v425 = vshrl.u32 683565275, %v424
        %v426 = vshll.u32 683565275, %v423
        %v427 = vshrl.u32 2475754826, %v424
        %v428 = vor.u32 %v426, %v427
        %v429 = vshll.u32 2475754826, %v423
        %v430 = vshrl.u32 2131351028, %v424
        %v431 = vor.u32 %v429, %v430
        %v432 = vshll.u32 2131351028, %v423
        %v433 = vshrl.u32 2102212464, %v424
        %v434 = vor.u32 %v432, %v433
        %v435 = vshll.u32 2102212464, %v423
        %v436 = vshrl.u32 920167782, %v424
        %v437 = vor.u32 %v435, %v436
        %v438 = vshll.u32 920167782, %v423
        %v439 = vshrl.u32 1326507024, %v424
        %v440 = vor.u32 %v438, %v439
        %vm441 = vcmp.lt.s32.totalorder %v422, 1
        %vm442 = vcmp.lt.s32.totalorder %v422, 2
        %vm443 = vcmp.lt.s32.totalorder %v422, 3
        %vm444 = vcmp.lt.s32.totalorder %v422, 4
        %v445 = vsel %vm441, %v425, %v428
        %v446 = vsel %vm444, %v434, 2102212464
        %v447 = vsel %vm443, %v431, %v446
        %v448 = vsel %vm442, %v445, %v447
        %v449 = vsel %vm441, %v428, %v431
        %v450 = vsel %vm444, %v437, 920167782
        %v451 = vsel %vm443, %v434, %v450
        %v452 = vsel %vm442, %v449, %v451
        %v453 = vsel %vm441, %v431, %v434
        %v454 = vsel %vm444, %v440, 1326507024
        %v455 = vsel %vm443, %v437, %v454
        %v456 = vsel %vm442, %v453, %v455
        %v457 = vshll.u32 %v417, 8
        %v458 = vmul.u32.u64.compose %v457, %v456
        %v459 = vextract.low.u32 %v458
        %v460 = vextract.high.u32 %v458
        %v461 = vmul.u32.u64.compose %v457, %v452
        %v462 = vextract.low.u32 %v461
        %v463 = vextract.high.u32 %v461
        %v464 = vmul.u32 %v457, %v448
        %v465 = vadd.s32 %v460, %v462
        %vm466 = vc.u32 %v460, %v462
        %v467 = vadd.s32 %v463, 1
        %v468 = vsel %vm466, %v467, %v463
        %v469 = vadd.s32 %v464, %v468
        %v470 = vadd.s32 %v469, 536870912
        %v471 = vshrl.u32 %v470, 30
        %v472 = vshll.u32 %v471, 30
        %v473 = vsub.s32 %v469, %v472
        %vm474 = vcmp.lt.s32.totalorder %v473, 0
        %v475 = vsub.s32 0, %v473
        %v476 = vsel %vm474, %v475, %v473
        %v477 = vclz %v476
        %v478 = vsub.s32 %v477, 2
        %vm479 = vcmp.gt.s32.totalorder 0, %v478
        %v480 = vsel %vm479, 0, %v478
        %v481 = vsub.s32 32, %v480
        %v482 = vshll.u32 %v473, %v480
        %v483 = vshrl.u32 %v465, %v481
        %v484 = vor.u32 %v482, %v483
        %v485 = vsub.s32 4294967266, %v480
        %v486 = vadd.s32 %v485, 127
        %v487 = vshll.u32 %v486, 23
        %v488 = vor.u32 4788187, %v487
        %v489 = vand.u32 2147483647, %v488
        %v491 = vcvt.s32.f32 %v484
        %v492 = vmul.f32 %v491, %v489
        %v493 = vxor.u32 %v492, 2147483648
        %v494 = vsel %vm411, %v493, %v492
        %v495 = vsub.s32 4, %v471
        %v496 = vsel %vm411, %v495, %v471
        %v497 = vsel %vm410, %v305, %v494
        %v498 = vsel %vm410, 0, %v496
        %v499 = vcosq.f32.pop %v497
        %v500 = vsinq.f32.pop %v497
        %vm501 = vweird.f32 %v305
        %v502 = vadd.s32 %v498, 3
        %v503 = vand.u32 %v502, 3
        %vm504 = vcmp.lt.s32.totalorder %v503, 2
        %vm505 = vcmp.eq.s32.totalorder %v503, 0
        %v506 = vxor.u32 %v500, 2147483648
        %v507 = vsel %vm505, %v499, %v506
        %vm508 = vcmp.eq.s32.totalorder %v503, 2
        %v509 = vxor.u32 %v499, 2147483648
        %v510 = vsel %vm508, %v509, %v500
        %v511 = vsel %vm504, %v507, %v510
        %v512 = vsel %vm501, nan, %v511
        %v513 = vpack.c.bf16 %v408, %v408
        %v514 = vpack.c.bf16 %v512, %v512
        %v515 = vld [vmem:[#allocation2] sm:$0xf]
        %v516 = vld [vmem:[#allocation2 + $0x4] sm:$0xf]
        %v517 = vld [vmem:[#allocation2 + $0x8] sm:$0xf]
        %v518 = vld [vmem:[#allocation2 + $0xc] sm:$0xf]
        %v519 = vld [vmem:[#allocation2 + $0x10] sm:$0xf]
        %v520 = vld [vmem:[#allocation2 + $0x14] sm:$0xf]
        %v521 = vld [vmem:[#allocation2 + $0x18] sm:$0xf]
        %v522 = vld [vmem:[#allocation2 + $0x1c] sm:$0xf]
        %v523 = vld [vmem:[#allocation2 + $0x20] sm:$0xf]
        %v524 = vld [vmem:[#allocation2 + $0x24] sm:$0xf]
        %v525 = vld [vmem:[#allocation2 + $0x28] sm:$0xf]
        %v526 = vld [vmem:[#allocation2 + $0x2c] sm:$0xf]
        %v527 = vld [vmem:[#allocation2 + $0x30] sm:$0xf]
        %v528 = vld [vmem:[#allocation2 + $0x34] sm:$0xf]
        %v529 = vld [vmem:[#allocation2 + $0x38] sm:$0xf]
        %v530 = vld [vmem:[#allocation2 + $0x3c] sm:$0xf]
        %v531 = vld [vmem:[#allocation2 + $0x40] sm:$0xf]
        %v532 = vld [vmem:[#allocation2 + $0x44] sm:$0xf]
        %v533 = vld [vmem:[#allocation2 + $0x48] sm:$0xf]
        %v534 = vld [vmem:[#allocation2 + $0x4c] sm:$0xf]
        %v535 = vld [vmem:[#allocation2 + $0x50] sm:$0xf]
        %v536 = vld [vmem:[#allocation2 + $0x54] sm:$0xf]
        %v537 = vld [vmem:[#allocation2 + $0x58] sm:$0xf]
        %v538 = vld [vmem:[#allocation2 + $0x5c] sm:$0xf]
        %v539 = vld [vmem:[#allocation2 + $0x60] sm:$0xf]
        %v540 = vld [vmem:[#allocation2 + $0x64] sm:$0xf]
        %v541 = vld [vmem:[#allocation2 + $0x68] sm:$0xf]
        %v542 = vld [vmem:[#allocation2 + $0x6c] sm:$0xf]
        %v543 = vld [vmem:[#allocation2 + $0x70] sm:$0xf]
        %v544 = vld [vmem:[#allocation2 + $0x74] sm:$0xf]
        %v545 = vld [vmem:[#allocation2 + $0x78] sm:$0xf]
        %v546 = vld [vmem:[#allocation2 + $0x7c] sm:$0xf]
        %v547 = vld [vmem:[%s3] sm:$0x1]
        %v549 = vlaneseq
        %v550 = vshrl.u32 %v549, 7
        %v551 = vsub.s32 0, %v550
        %v552 = vrot.slane %v547, %v551
        %v586 = vunpack.c.l.b16 %v515
        %v587 = vunpack.c.l.b16 %v516
        %v588 = vunpack.c.l.b16 %v517
        %v589 = vunpack.c.l.b16 %v518
        %v590 = vunpack.c.l.b16 %v519
        %v591 = vunpack.c.l.b16 %v520
        %v592 = vunpack.c.l.b16 %v521
        %v593 = vunpack.c.l.b16 %v522
        %v594 = vunpack.c.l.b16 %v523
        %v595 = vunpack.c.l.b16 %v524
        %v596 = vunpack.c.l.b16 %v525
        %v597 = vunpack.c.l.b16 %v526
        %v598 = vunpack.c.l.b16 %v527
        %v599 = vunpack.c.l.b16 %v528
        %v600 = vunpack.c.l.b16 %v529
        %v601 = vunpack.c.l.b16 %v530
        %v602 = vunpack.c.l.b16 %v531
        %v603 = vunpack.c.l.b16 %v532
        %v604 = vunpack.c.l.b16 %v533
        %v605 = vunpack.c.l.b16 %v534
        %v606 = vunpack.c.l.b16 %v535
        %v607 = vunpack.c.l.b16 %v536
        %v608 = vunpack.c.l.b16 %v537
        %v609 = vunpack.c.l.b16 %v538
        %v610 = vunpack.c.l.b16 %v539
        %v611 = vunpack.c.l.b16 %v540
        %v612 = vunpack.c.l.b16 %v541
        %v613 = vunpack.c.l.b16 %v542
        %v614 = vunpack.c.l.b16 %v543
        %v615 = vunpack.c.l.b16 %v544
        %v616 = vunpack.c.l.b16 %v545
        %v617 = vunpack.c.l.b16 %v546
        %v618 = vpack.c.b16 %v587, %v586
        %v619 = vpack.c.b16 %v589, %v588
        %v620 = vpack.c.b16 %v591, %v590
        %v621 = vpack.c.b16 %v593, %v592
        %v622 = vpack.c.b16 %v595, %v594
        %v623 = vpack.c.b16 %v597, %v596
        %v624 = vpack.c.b16 %v599, %v598
        %v625 = vpack.c.b16 %v601, %v600
        %v626 = vpack.c.b16 %v603, %v602
        %v627 = vpack.c.b16 %v605, %v604
        %v628 = vpack.c.b16 %v607, %v606
        %v629 = vpack.c.b16 %v609, %v608
        %v630 = vpack.c.b16 %v611, %v610
        %v631 = vpack.c.b16 %v613, %v612
        %v632 = vpack.c.b16 %v615, %v614
        %v633 = vpack.c.b16 %v617, %v616
        %650 = vmatprep.subr.bf16.mxu0 0
        %651 = vmatpush1.bf16.msra.mxu0 %v625
        %652 = vmatprep.subr.bf16.mxu0 0
        %653 = vmatpush1.bf16.msra.mxu0 %v624
        %654 = vmatprep.subr.bf16.mxu0 0
        %655 = vmatpush1.bf16.msra.mxu0 %v623
        %656 = vmatprep.subr.bf16.mxu0 0
        %657 = vmatpush1.bf16.msra.mxu0 %v622
        %658 = vmatprep.subr.bf16.mxu0 0
        %659 = vmatpush1.bf16.msra.mxu0 %v621
        %660 = vmatprep.subr.bf16.mxu0 0
        %661 = vmatpush1.bf16.msra.mxu0 %v620
        %662 = vmatprep.subr.bf16.mxu0 0
        %663 = vmatpush1.bf16.msra.mxu0 %v619
        %664 = vmatprep.subr.bf16.mxu0 0
        %665 = vmatpush1.bf16.msra.mxu0 %v618
        %666 = vmatprep.subr.bf16.mxu0 0
        %667 = vmatpush2.bf16.msra.mxu0 %v633
        %668 = vmatprep.subr.bf16.mxu0 0
        %669 = vmatpush2.bf16.msra.mxu0 %v632
        %670 = vmatprep.subr.bf16.mxu0 0
        %671 = vmatpush2.bf16.msra.mxu0 %v631
        %672 = vmatprep.subr.bf16.mxu0 0
        %673 = vmatpush2.bf16.msra.mxu0 %v630
        %674 = vmatprep.subr.bf16.mxu0 0
        %675 = vmatpush2.bf16.msra.mxu0 %v629
        %676 = vmatprep.subr.bf16.mxu0 0
        %677 = vmatpush2.bf16.msra.mxu0 %v628
        %678 = vmatprep.subr.bf16.mxu0 0
        %679 = vmatpush2.bf16.msra.mxu0 %v627
        %680 = vmatprep.subr.bf16.mxu0 0
        %681 = vmatpush2.bf16.msra.mxu0 %v626
        %682 = vmatprep.mubr.bf16.mxu0 %v514
        %683 = vmatmul.mubr.bf16.gmra.mxu0 %v513
        %v684 = vpop.f32.mrf.mxu0
        %v685 = vadd.f32 %v552, %v684
        %v686 = vpop.f32.mrf.mxu0
        %v687 = vpop.f32.mrf.mxu0
        %v688 = vpop.f32.mrf.mxu0
        %689 = vdwg.mxu0
        %v690 = vxor.u32 %v685, 2147483648
        %v691 = vmul.f32 %v690, 1.442695
        %v692 = vpow.pop %v691
        %v693 = vadd.f32 %v692, 1.0
        %v694 = vrcp.pop %v693
        %v695 = vmul.f32 1.0, %v694
        %v696 = vmul.f32 %v685, %v695
        %v697 = vpack.c.bf16 %v696, %v696
        %v698 = vld [vmem:[#allocation5] sm:$0xf]
        %v699 = vld [vmem:[#allocation5 + $0x4] sm:$0xf]
        %v700 = vld [vmem:[#allocation5 + $0x8] sm:$0xf]
        %v701 = vld [vmem:[#allocation5 + $0xc] sm:$0xf]
        %v702 = vld [vmem:[#allocation5 + $0x10] sm:$0xf]
        %v703 = vld [vmem:[#allocation5 + $0x14] sm:$0xf]
        %v704 = vld [vmem:[#allocation5 + $0x18] sm:$0xf]
        %v705 = vld [vmem:[#allocation5 + $0x1c] sm:$0xf]
        %v706 = vld [vmem:[#allocation5 + $0x20] sm:$0xf]
        %v707 = vld [vmem:[#allocation5 + $0x24] sm:$0xf]
        %v708 = vld [vmem:[#allocation5 + $0x28] sm:$0xf]
        %v709 = vld [vmem:[#allocation5 + $0x2c] sm:$0xf]
        %v710 = vld [vmem:[#allocation5 + $0x30] sm:$0xf]
        %v711 = vld [vmem:[#allocation5 + $0x34] sm:$0xf]
        %v712 = vld [vmem:[#allocation5 + $0x38] sm:$0xf]
        %v713 = vld [vmem:[#allocation5 + $0x3c] sm:$0xf]
        %v714 = vld [vmem:[%s5] sm:$0x1]
        %v716 = vlaneseq
        %v717 = vshrl.u32 %v716, 7
        %v718 = vsub.s32 0, %v717
        %v719 = vrot.slane %v714, %v718
        %v737 = vunpack.c.l.b16 %v698
        %v738 = vunpack.c.l.b16 %v699
        %v739 = vunpack.c.l.b16 %v700
        %v740 = vunpack.c.l.b16 %v701
        %v741 = vunpack.c.l.b16 %v702
        %v742 = vunpack.c.l.b16 %v703
        %v743 = vunpack.c.l.b16 %v704
        %v744 = vunpack.c.l.b16 %v705
        %v745 = vunpack.c.l.b16 %v706
        %v746 = vunpack.c.l.b16 %v707
        %v747 = vunpack.c.l.b16 %v708
        %v748 = vunpack.c.l.b16 %v709
        %v749 = vunpack.c.l.b16 %v710
        %v750 = vunpack.c.l.b16 %v711
        %v751 = vunpack.c.l.b16 %v712
        %v752 = vunpack.c.l.b16 %v713
        %v753 = vpack.c.b16 %v738, %v737
        %v754 = vpack.c.b16 %v740, %v739
        %v755 = vpack.c.b16 %v742, %v741
        %v756 = vpack.c.b16 %v744, %v743
        %v757 = vpack.c.b16 %v746, %v745
        %v758 = vpack.c.b16 %v748, %v747
        %v759 = vpack.c.b16 %v750, %v749
        %v760 = vpack.c.b16 %v752, %v751
        %769 = vmatprep.subr.bf16.mxu0 0
        %770 = vmatpush1.bf16.msra.mxu0 %v760
        %771 = vmatprep.subr.bf16.mxu0 0
        %772 = vmatpush1.bf16.msra.mxu0 %v759
        %773 = vmatprep.subr.bf16.mxu0 0
        %774 = vmatpush1.bf16.msra.mxu0 %v758
        %775 = vmatprep.subr.bf16.mxu0 0
        %776 = vmatpush1.bf16.msra.mxu0 %v757
        %777 = vmatprep.subr.bf16.mxu0 0
        %778 = vmatpush1.bf16.msra.mxu0 %v756
        %779 = vmatprep.subr.bf16.mxu0 0
        %780 = vmatpush1.bf16.msra.mxu0 %v755
        %781 = vmatprep.subr.bf16.mxu0 0
        %782 = vmatpush1.bf16.msra.mxu0 %v754
        %783 = vmatprep.subr.bf16.mxu0 0
        %784 = vmatpush1.bf16.msra.mxu0 %v753
        %785 = vmatprep.subr.bf16.mxu0 0
        %786 = vmatpush2.bf16.msra.mxu0 0
        %787 = vmatprep.subr.bf16.mxu0 0
        %788 = vmatpush2.bf16.msra.mxu0 0
        %789 = vmatprep.subr.bf16.mxu0 0
        %790 = vmatpush2.bf16.msra.mxu0 0
        %791 = vmatprep.subr.bf16.mxu0 0
        %792 = vmatpush2.bf16.msra.mxu0 0
        %793 = vmatprep.subr.bf16.mxu0 0
        %794 = vmatpush2.bf16.msra.mxu0 0
        %795 = vmatprep.subr.bf16.mxu0 0
        %796 = vmatpush2.bf16.msra.mxu0 0
        %797 = vmatprep.subr.bf16.mxu0 0
        %798 = vmatpush2.bf16.msra.mxu0 0
        %799 = vmatprep.subr.bf16.mxu0 0
        %800 = vmatpush2.bf16.msra.mxu0 0
        %801 = vmatprep.mubr.bf16.mxu0 0
        %802 = vmatmul.mubr.bf16.gmra.mxu0 %v697
        %v803 = vpop.f32.mrf.mxu0
        %v804 = vadd.f32 %v719, %v803
        %v805 = vpop.f32.mrf.mxu0
        %v806 = vpop.f32.mrf.mxu0
        %v807 = vpop.f32.mrf.mxu0
        %808 = vdwg.mxu0
        %809 = vst [vmem:[%s286] sm:$0xff] %v804
        %s810 = sand.u32 %s175, 1
        %s811 = scalar_lea.sflag [#allocation4], %s810
        %s812 = sand.u32 %s175, 1
        %s813 = smul.addr %s812, 8
        %s814 = scalar_lea.vmem [#allocation7], %s813
        // Predicated region
        $region53: #{tpu_custom_call.1} parent=43 // pred_check
          %p815 = pneg %p185
        $region54: #{tpu_custom_call.1} parent=43 // pred_check_branch
          %817 = sbr.rel (%p815) target = $region56
        $region55: #{tpu_custom_call.1} parent=43 // pred_region
          %s819 = ssub.s32 128, 128
          %820 = vsyncadd %s811, %s819
          %s821 = sadd.s32 %s27, %s26
          %s822 = smul.addr %s821, 128
          %s823 = scalar_lea.hbm %s6, %s822
          %s825 = sshll.u32 %s814, 4
          %s826 = int_to_ptr.vmem [resolvable:$true] %s825
          %828 = dma.vmem_to_hbm [thread:$0]  %s826, 128, %s823, %s811
        $region56: #{tpu_custom_call.1} parent=43 // pred_fallthru
          _
      $region44: #{tpu_custom_call.1} parent=5 // pred_fallthru
        _
      %p829 = scmp.le.s32.totalorder 2, %s17
      // Predicated region
      $region57: #{tpu_custom_call.1} parent=5 // pred_check
        %p830 = pneg %p829
      $region58: #{tpu_custom_call.1} parent=5 // pred_check_branch
        %832 = sbr.rel (%p830) target = $region60
      $region59: #{tpu_custom_call.1} parent=5 // pred_region
        %s833 = ssub.s32 %s17, 2
        // Predicated region
        $region61: #{tpu_custom_call.1} parent=59 // pred_check
          %p834 = pneg %p191
        $region62: #{tpu_custom_call.1} parent=59 // pred_check_branch
          %836 = sbr.rel (%p834) target = $region64
        $region63: #{tpu_custom_call.1} parent=59 // pred_region
          %s837 = sand.u32 %s176, 1
          %s838 = scalar_lea.sflag [#allocation4], %s837
          %s839 = sand.u32 %s176, 1
          %s840 = smul.addr %s839, 8
          %s841 = scalar_lea.vmem [#allocation7], %s840
          %842 = dma.done %s838, 128
        $region64: #{tpu_custom_call.1} parent=59 // pred_fallthru
          _
      $region60: #{tpu_custom_call.1} parent=5 // pred_fallthru
        _
    $region6: #{tpu_custom_call.1} parent=1 // loop_footer
      %s21 = sadd.s32 1, %s17
    $region7: #{tpu_custom_call.1} parent=1 // loop_footer_branch
      %16 = sbr.rel target = $region3
    $region8: #{tpu_custom_call.1} parent=1 // loop_exit
      _
    %843 = vsyncpa [#allocation3], 1
    %s844 = scalar_lea.sflag [#allocation3], 1
    %845 = vsyncpa %s844, 1
    %846 = vsyncpa [#allocation6], 1
    %847 = vsyncpa [#allocation4], 1
    %s848 = scalar_lea.sflag [#allocation4], 1
    %849 = vsyncpa %s848, 1

</llo_original>
